<compile_context>
chip_gen: v5e
topology: v5e:2x2
jax: 0.10.0
libtpu: 0.0.40
codegen_flags: <defaults>
</compile_context>

<pallas_src>
import functools

import numpy as np
import jax
import jax.numpy as jnp
from jax.experimental import pallas as pl
from jax.experimental.pallas import tpu as pltpu


LANE = 128  # TPU lane width; output-channel padding target


# --------------------------------------------------------------------------
# Fused Pallas kernel (single invocation, batch folded along sublanes):
#   ConvTranspose1d(k=41) -> [concat(c), Conv1d(k=3,p=1), LeakyReLU(0.2)]
#   -> Conv1d(k=16, s=4) -> Sigmoid
# --------------------------------------------------------------------------
def _fused_kernel(*refs, B, CmidP, bcondition, alpha=0.2):
    if bcondition:
        (x_ref, c_ref, sdn_ref, sup_ref, sel_ref,
         w1_ref, b1_ref, w2h_ref, w2c_ref, w3_ref, b3_ref, o_ref) = refs
    else:
        (x_ref, sel_ref, w1_ref, b1_ref, w3_ref, b3_ref, o_ref) = refs

    # ---- stage 1: one MXU contraction over the K1*Cin im2col axis ----------
    # x: (B*L, K1*Cin)   w1: (K1*Cin, CmidP)   (output channels zero-padded)
    y1 = jnp.dot(x_ref[...], w1_ref[...],
                 preferred_element_type=jnp.float32) + b1_ref[...]   # (B*L, CmidP)

    if bcondition:
        # ---- stage 2: concat(c) -> Conv1d(k=3, p=1, no bias) -> LeakyReLU --
        # W2h/W2c hold the three taps side by side in 128-lane-aligned output
        # blocks, so two dots produce all taps at once and the slices below
        # are tile-aligned (free).
        t_all = (jnp.dot(y1, w2h_ref[...], preferred_element_type=jnp.float32)
                 + jnp.dot(c_ref[...], w2c_ref[...],
                           preferred_element_type=jnp.float32))       # (B*L, 3*CmidP)
        tap0 = t_all[:, 0 * CmidP:1 * CmidP]
        tap1 = t_all[:, 1 * CmidP:2 * CmidP]
        tap2 = t_all[:, 2 * CmidP:3 * CmidP]
        # padding=1: y2[t] = tap0[t-1] + tap1[t] + tap2[t+1], zeros at the
        # per-batch edges.  Constant block-diagonal shift matrices (from the
        # wrapper) implement the shifts, the zero boundaries, and the
        # folded-batch isolation in one go.
        y2 = (jnp.dot(sdn_ref[...], tap0, preferred_element_type=jnp.float32)
              + tap1
              + jnp.dot(sup_ref[...], tap2, preferred_element_type=jnp.float32))
        y2 = jnp.where(y2 > 0.0, y2, alpha * y2)                      # LeakyReLU(0.2)
    else:
        y2 = y1

    # ---- stage 3: Conv1d(Cmid, 1, k=16, s=4) -> Sigmoid (L==16: one tap) ---
    w3 = w3_ref[...]                                                  # (L, CmidP)
    w3_full = w3 if B == 1 else jnp.concatenate([w3] * B, axis=0)     # (B*L, CmidP)
    prod = y2 * w3_full
    per_b = jnp.dot(sel_ref[...], prod,
                    preferred_element_type=jnp.float32)               # (B, CmidP)
    logits = jnp.sum(per_b, axis=1, keepdims=True) + b3_ref[...]      # (B, 1)
    o_ref[...] = jax.nn.sigmoid(logits)


# --------------------------------------------------------------------------
# One-time weight re-layout (hoisted out of the per-call hot path)
# --------------------------------------------------------------------------
def prepare_params(params, bcondition):
    """Produces lane-dense, MXU-ready weight layouts:
      w1p : (K1*Cin, CmidP)  flipped ConvTranspose taps as one im2col weight
      b1p : (1, CmidP)
      w2h : (CmidP, 3*CmidP) conv2 taps side by side (h-channel block)
      w2c : (nef,   3*CmidP) conv2 taps side by side (c-channel block)
      w3p : (K3, CmidP)
      b3r : (1, 1)
    Output channels are zero-padded to CmidP = 128 so every VMEM block is tile
    aligned (dense DMAs, no narrow lane slices in the kernel)."""
    W1 = np.asarray(params["W1"], np.float32)          # (Cin, Cmid, K1)
    b1 = np.asarray(params["b1"], np.float32)          # (Cmid,)
    Cin, Cmid, K1 = W1.shape
    CmidP = LANE * ((Cmid + LANE - 1) // LANE)

    # W1flat[m*Cin + c, o] = W1[c, o, K1-1-m]   (flipped, tap-major)
    W1k = np.transpose(W1[:, :, ::-1], (2, 0, 1))      # (K1, Cin, Cmid)
    w1p = np.zeros((K1 * Cin, CmidP), np.float32)
    w1p[:, :Cmid] = W1k.reshape(K1 * Cin, Cmid)
    b1p = np.zeros((1, CmidP), np.float32)
    b1p[0, :Cmid] = b1

    W3 = np.asarray(params["W3"], np.float32)          # (1, Cmid, K3)
    b3 = np.asarray(params["b3"], np.float32)          # (1,)
    K3 = W3.shape[2]
    w3p = np.zeros((K3, CmidP), np.float32)
    w3p[:, :Cmid] = W3[0].T                            # w3p[t, c] = W3[0, c, t]
    b3r = b3.reshape(1, 1).astype(np.float32)

    prep = {"w1p": w1p, "b1p": b1p, "w3p": w3p, "b3r": b3r}

    if bcondition:
        W2 = np.asarray(params["W2"], np.float32)      # (Cmid, Cmid+nef, K2)
        Cout2, Cin2, K2 = W2.shape
        assert Cout2 == Cmid and K2 == 3
        nef = Cin2 - Cmid
        w2h = np.zeros((CmidP, K2 * CmidP), np.float32)
        w2c = np.zeros((nef, K2 * CmidP), np.float32)
        for k in range(K2):
            Wt = W2[:, :, k].T                         # (Cin2, Cmid)
            w2h[:Cmid, k * CmidP:k * CmidP + Cmid] = Wt[:Cmid, :]
            w2c[:, k * CmidP:k * CmidP + Cmid] = Wt[Cmid:, :]
        prep["w2h"] = w2h
        prep["w2c"] = w2c

    return {k: jnp.asarray(v) for k, v in prep.items()}


# --------------------------------------------------------------------------
# Hot path: im2col + one fused gridless pallas_call
# --------------------------------------------------------------------------
def d_get_logits_forward(prep, h_code, c_code=None, *, bcondition=False):
    B, Cin, L = h_code.shape
    w1p = prep["w1p"]
    KC, CmidP = w1p.shape
    K1 = KC // Cin
    K3 = prep["w3p"].shape[0]
    # PyTorch repeats c_code to length 16 and the final conv has k=16, s=4
    # (single output position), so the module implicitly requires L == 16.
    assert L == 16 and K3 == 16 and K1 * Cin == KC
    pad1 = (K1 - 1) // 2
    BL = B * L

    # im2col for the ConvTranspose: X[b*L+t, m*Cin+c] = h_padded[b, c, t+m]
    # (pad + gather + transpose fuse into one XLA producer; channels on lanes).
    h_pad = jnp.pad(h_code.astype(jnp.float32), ((0, 0), (0, 0), (pad1, pad1)))
    idx = jnp.asarray((np.arange(L)[:, None] + np.arange(K1)[None, :]).astype(np.int32))
    x = jnp.take(h_pad, idx, axis=2)                                   # (B, Cin, L, K1)
    x = jnp.transpose(x, (0, 2, 3, 1)).reshape(BL, K1 * Cin)           # (BL, K1*Cin)

    # Tiny trace-time constants (B, L are static under jit):
    #   sel      : per-batch row-sum selector for the final k=16 reduction
    #   sdn/sup  : block-diagonal +/-1 row-shift matrices with zero boundaries
    t_in = np.arange(BL) % L
    sel_np = np.zeros((B, BL), np.float32)
    for b in range(B):
        sel_np[b, b * L:(b + 1) * L] = 1.0
    sel = jnp.asarray(sel_np)

    out_shape = jax.ShapeDtypeStruct((B, 1), jnp.float32)
    vmem_spec = pl.BlockSpec(memory_space=pltpu.MemorySpace.VMEM)

    if bcondition and c_code is not None:
        nef = c_code.shape[1]
        c_rows = jnp.broadcast_to(
            c_code.astype(jnp.float32)[:, None, :], (B, L, nef)).reshape(BL, nef)

        sdn_np = np.zeros((BL, BL), np.float32)
        sup_np = np.zeros((BL, BL), np.float32)
        for r in range(BL):
            if t_in[r] != 0:
                sdn_np[r, r - 1] = 1.0                  # picks tap0[t-1]
            if t_in[r] != L - 1:
                sup_np[r, r + 1] = 1.0                  # picks tap2[t+1]

        kernel = functools.partial(_fused_kernel, B=B, CmidP=CmidP,
                                   bcondition=True)
        args = (x, c_rows, jnp.asarray(sdn_np), jnp.asarray(sup_np), sel,
                prep["w1p"], prep["b1p"], prep["w2h"], prep["w2c"],
                prep["w3p"], prep["b3r"])
    else:
        kernel = functools.partial(_fused_kernel, B=B, CmidP=CmidP,
                                   bcondition=False)
        args = (x, sel, prep["w1p"], prep["b1p"], prep["w3p"], prep["b3r"])

    out = pl.pallas_call(
        kernel,
        out_shape=out_shape,
        in_specs=[vmem_spec] * len(args),
        out_specs=vmem_spec,
    )(*args)
    return out.reshape(-1)                              # matches .view(-1)


# --------------------------------------------------------------------------
# Deterministic parameter init (shapes follow the PyTorch module __init__)
# --------------------------------------------------------------------------
def init_params(key, ndf, nef):
    k1, k2, k3, k4, k5 = jax.random.split(key, 5)
    cin, cmid = ndf * 8, ndf // 2
    return {
        # ConvTranspose1d weight layout: (in_ch, out_ch, K)
        "W1": jax.random.normal(k1, (cin, cmid, 41), jnp.float32) * 0.02,
        "b1": jax.random.normal(k2, (cmid,), jnp.float32) * 0.02,
        # Conv1d weight layout: (out_ch, in_ch, K)
        "W2": jax.random.normal(k3, (cmid, cmid + nef, 3), jnp.float32) * 0.1,
        "W3": jax.random.normal(k4, (1, cmid, 16), jnp.float32) * 0.1,
        "b3": jax.random.normal(k5, (1,), jnp.float32) * 0.1,
    }


# --------------------------------------------------------------------------
# Independent numpy reference (direct conv definitions)
# --------------------------------------------------------------------------
def ref_forward(p, h, c, bcondition):
    W1, b1 = np.asarray(p["W1"], np.float64), np.asarray(p["b1"], np.float64)
    B, Cin, L = h.shape
    _, Cout1, K1 = W1.shape
    pad = 20
    y1 = np.zeros((B, Cout1, L))
    for t in range(L):
        for k in range(K1):
            s = t + pad - k
            if 0 <= s < L:
                y1[:, :, t] += h[:, :, s] @ W1[:, :, k]
    y1 += b1[None, :, None]
    if bcondition:
        cc = np.repeat(c.reshape(B, -1, 1), L, axis=2)
        x2 = np.concatenate([y1, cc], axis=1)
        W2 = np.asarray(p["W2"], np.float64)
        Cout2, Cin2, K2 = W2.shape
        xp = np.pad(x2, ((0, 0), (0, 0), (1, 1)))
        y2 = np.zeros((B, Cout2, L))
        for t in range(L):
            for k in range(K2):
                y2[:, :, t] += xp[:, :, t + k] @ W2[:, :, k].T
        y2 = np.where(y2 > 0, y2, 0.2 * y2)
    else:
        y2 = y1
    W3, b3 = np.asarray(p["W3"], np.float64), np.asarray(p["b3"], np.float64)
    y3 = np.einsum("bck,ock->bo", y2[:, :, :16], W3) + b3[None, :]
    return (1.0 / (1.0 + np.exp(-y3))).reshape(-1)


if __name__ == "__main__":
    ndf, nef = 8, 8
    B, L = 2, 16          # L must be 16 (c_code repeated to 16; final conv k=16)
    key = jax.random.PRNGKey(0)
    kp, kh, kc = jax.random.split(key, 3)

    params = init_params(kp, ndf, nef)
    h_code = jax.random.normal(kh, (B, ndf * 8, L), jnp.float32)   # NCL
    c_code = jax.random.normal(kc, (B, nef), jnp.float32)

    # One-time weight prep (hoisted out of the jitted hot path).
    prep_cond = prepare_params(params, bcondition=True)
    prep_uncond = prepare_params(params, bcondition=False)

    fwd_cond = jax.jit(lambda p, h, c: d_get_logits_forward(p, h, c, bcondition=True))
    fwd_uncond = jax.jit(lambda p, h: d_get_logits_forward(p, h, bcondition=False))

    # f32 accumulation vs f64 reference; same tolerance as the previous
    # (passing) version — the per-term MXU rounding is unchanged, only the
    # accumulation structure moved into the MXU.
    TOL = 5e-3

    # bcondition=True branch
    out_cond = jax.block_until_ready(fwd_cond(prep_cond, h_code, c_code))
    ref_cond = ref_forward(params, np.asarray(h_code, np.float64),
                           np.asarray(c_code, np.float64), True)
    np.testing.assert_allclose(np.asarray(out_cond), ref_cond, atol=TOL, rtol=TOL)

    # bcondition=False branch
    out_uncond = jax.block_until_ready(fwd_uncond(prep_uncond, h_code))
    ref_uncond = ref_forward(params, np.asarray(h_code, np.float64), None, False)
    np.testing.assert_allclose(np.asarray(out_uncond), ref_uncond, atol=TOL, rtol=TOL)

    assert out_cond.shape == (B,) and out_uncond.shape == (B,)
    print("KERNEL_OK")
</pallas_src>

<mosaic_0001>
module attributes {stable_mosaic.version = 11 : i64} {
  func.func @_fused_kernel(%arg0: memref<32x2624xf32, #tpu.memory_space<vmem>>, %arg1: memref<32x8xf32, #tpu.memory_space<vmem>>, %arg2: memref<32x32xf32, #tpu.memory_space<vmem>>, %arg3: memref<32x32xf32, #tpu.memory_space<vmem>>, %arg4: memref<2x32xf32, #tpu.memory_space<vmem>>, %arg5: memref<2624x128xf32, #tpu.memory_space<vmem>>, %arg6: memref<1x128xf32, #tpu.memory_space<vmem>>, %arg7: memref<128x384xf32, #tpu.memory_space<vmem>>, %arg8: memref<8x384xf32, #tpu.memory_space<vmem>>, %arg9: memref<16x128xf32, #tpu.memory_space<vmem>>, %arg10: memref<1x1xf32, #tpu.memory_space<vmem>>, %arg11: memref<2x1xf32, #tpu.memory_space<vmem>>) attributes {dimension_semantics = [], scalar_prefetch = 0 : i64, scratch_operands = 0 : i64, tpu.core_type = #tpu.core_type<tc>} {
    %c0 = arith.constant 0 : index
    %c0_0 = arith.constant 0 : index
    %0 = vector.load %arg0[%c0, %c0_0] : memref<32x2624xf32, #tpu.memory_space<vmem>>, vector<32x2624xf32>
    %c0_1 = arith.constant 0 : index
    %c0_2 = arith.constant 0 : index
    %1 = vector.load %arg5[%c0_1, %c0_2] : memref<2624x128xf32, #tpu.memory_space<vmem>>, vector<2624x128xf32>
    %cst = arith.constant dense<0.000000e+00> : vector<32x128xf32>
    %2 = tpu.matmul %0, %1, %cst {dimension_numbers = #tpu.dot_dimension_numbers<[1], [0], [0], [1], [0, 0, 1, 1], [], []>} : vector<32x2624xf32>, vector<2624x128xf32>, vector<32x128xf32> -> vector<32x128xf32>
    %c0_3 = arith.constant 0 : index
    %c0_4 = arith.constant 0 : index
    %3 = vector.load %arg6[%c0_3, %c0_4] : memref<1x128xf32, #tpu.memory_space<vmem>>, vector<1x128xf32>
    %4 = vector.broadcast %3 : vector<1x128xf32> to vector<32x128xf32>
    %5 = arith.addf %2, %4 : vector<32x128xf32>
    %c0_5 = arith.constant 0 : index
    %c0_6 = arith.constant 0 : index
    %6 = vector.load %arg7[%c0_5, %c0_6] : memref<128x384xf32, #tpu.memory_space<vmem>>, vector<128x384xf32>
    %cst_7 = arith.constant dense<0.000000e+00> : vector<32x384xf32>
    %7 = tpu.matmul %5, %6, %cst_7 {dimension_numbers = #tpu.dot_dimension_numbers<[1], [0], [0], [1], [0, 0, 1, 1], [], []>} : vector<32x128xf32>, vector<128x384xf32>, vector<32x384xf32> -> vector<32x384xf32>
    %c0_8 = arith.constant 0 : index
    %c0_9 = arith.constant 0 : index
    %8 = vector.load %arg1[%c0_8, %c0_9] : memref<32x8xf32, #tpu.memory_space<vmem>>, vector<32x8xf32>
    %c0_10 = arith.constant 0 : index
    %c0_11 = arith.constant 0 : index
    %9 = vector.load %arg8[%c0_10, %c0_11] : memref<8x384xf32, #tpu.memory_space<vmem>>, vector<8x384xf32>
    %cst_12 = arith.constant dense<0.000000e+00> : vector<32x384xf32>
    %10 = tpu.matmul %8, %9, %cst_12 {dimension_numbers = #tpu.dot_dimension_numbers<[1], [0], [0], [1], [0, 0, 1, 1], [], []>} : vector<32x8xf32>, vector<8x384xf32>, vector<32x384xf32> -> vector<32x384xf32>
    %11 = arith.addf %7, %10 : vector<32x384xf32>
    %12 = vector.extract_strided_slice %11 {offsets = [0, 0], sizes = [32, 128], strides = [1, 1]} : vector<32x384xf32> to vector<32x128xf32>
    %13 = vector.extract_strided_slice %11 {offsets = [0, 128], sizes = [32, 128], strides = [1, 1]} : vector<32x384xf32> to vector<32x128xf32>
    %14 = vector.extract_strided_slice %11 {offsets = [0, 256], sizes = [32, 128], strides = [1, 1]} : vector<32x384xf32> to vector<32x128xf32>
    %c0_13 = arith.constant 0 : index
    %c0_14 = arith.constant 0 : index
    %15 = vector.load %arg2[%c0_13, %c0_14] : memref<32x32xf32, #tpu.memory_space<vmem>>, vector<32x32xf32>
    %cst_15 = arith.constant dense<0.000000e+00> : vector<32x128xf32>
    %16 = tpu.matmul %15, %12, %cst_15 {dimension_numbers = #tpu.dot_dimension_numbers<[1], [0], [0], [1], [0, 0, 1, 1], [], []>} : vector<32x32xf32>, vector<32x128xf32>, vector<32x128xf32> -> vector<32x128xf32>
    %17 = arith.addf %16, %13 : vector<32x128xf32>
    %c0_16 = arith.constant 0 : index
    %c0_17 = arith.constant 0 : index
    %18 = vector.load %arg3[%c0_16, %c0_17] : memref<32x32xf32, #tpu.memory_space<vmem>>, vector<32x32xf32>
    %cst_18 = arith.constant dense<0.000000e+00> : vector<32x128xf32>
    %19 = tpu.matmul %18, %14, %cst_18 {dimension_numbers = #tpu.dot_dimension_numbers<[1], [0], [0], [1], [0, 0, 1, 1], [], []>} : vector<32x32xf32>, vector<32x128xf32>, vector<32x128xf32> -> vector<32x128xf32>
    %20 = arith.addf %17, %19 : vector<32x128xf32>
    %cst_19 = arith.constant 0.000000e+00 : f32
    %21 = vector.broadcast %cst_19 : f32 to vector<32x128xf32>
    %22 = arith.cmpf ogt, %20, %21 : vector<32x128xf32>
    %cst_20 = arith.constant 2.000000e-01 : f32
    %23 = vector.broadcast %cst_20 : f32 to vector<32x128xf32>
    %24 = arith.mulf %23, %20 : vector<32x128xf32>
    %25 = arith.select %22, %20, %24 : vector<32x128xi1>, vector<32x128xf32>
    %c0_21 = arith.constant 0 : index
    %c0_22 = arith.constant 0 : index
    %26 = vector.load %arg9[%c0_21, %c0_22] : memref<16x128xf32, #tpu.memory_space<vmem>>, vector<16x128xf32>
    %27 = tpu.concatenate %26, %26 in 0 : vector<16x128xf32>, vector<16x128xf32> -> vector<32x128xf32>
    %28 = arith.mulf %25, %27 : vector<32x128xf32>
    %c0_23 = arith.constant 0 : index
    %c0_24 = arith.constant 0 : index
    %29 = vector.load %arg4[%c0_23, %c0_24] : memref<2x32xf32, #tpu.memory_space<vmem>>, vector<2x32xf32>
    %cst_25 = arith.constant dense<0.000000e+00> : vector<2x128xf32>
    %30 = tpu.matmul %29, %28, %cst_25 {dimension_numbers = #tpu.dot_dimension_numbers<[1], [0], [0], [1], [0, 0, 1, 1], [], []>} : vector<2x32xf32>, vector<32x128xf32>, vector<2x128xf32> -> vector<2x128xf32>
    %cst_26 = arith.constant dense<0.000000e+00> : vector<2xf32>
    %31 = vector.multi_reduction <add>, %30, %cst_26 [1] : vector<2x128xf32> to vector<2xf32>
    %32 = vector.shape_cast %31 : vector<2xf32> to vector<2x1xf32>
    %c0_27 = arith.constant 0 : index
    %c0_28 = arith.constant 0 : index
    %33 = vector.load %arg10[%c0_27, %c0_28] : memref<1x1xf32, #tpu.memory_space<vmem>>, vector<1x1xf32>
    %34 = vector.broadcast %33 : vector<1x1xf32> to vector<2x1xf32>
    %35 = arith.addf %32, %34 : vector<2x1xf32>
    %36 = arith.negf %35 : vector<2x1xf32>
    %37 = math.exp %36 : vector<2x1xf32>
    %cst_29 = arith.constant 1.000000e+00 : f32
    %38 = vector.broadcast %cst_29 : f32 to vector<2x1xf32>
    %39 = arith.addf %38, %37 : vector<2x1xf32>
    %40 = arith.divf %38, %39 : vector<2x1xf32>
    %c0_30 = arith.constant 0 : index
    %c0_31 = arith.constant 0 : index
    %41 = vector.load %arg11[%c0_30, %c0_31] : memref<2x1xf32, #tpu.memory_space<vmem>>, vector<2x1xf32>
    tpu.vector_store %arg11[%c0_30, %c0_31], %40 {strides = array<i32>} : memref<2x1xf32, #tpu.memory_space<vmem>>, vector<2x1xf32>,
    return
  }
}

</mosaic_0001>

<llo_original>
// kernel: _lambda_.1
$region0: #{_lambda_.1}
  #allocation0 [shape = 'u32[]', space=smem, size = 0x4, offset = 0x4, fixed_abs, tag = 'smem constant byte address 0x4 - core index']
  #allocation1 [shape = 'u32[72,128]{1,0:T(1,128)}', space=vmem, size = 0x9000, scoped, tag = 'internal scratch']
  #allocation2 [shape = 'f32[1,1]{1,0:T(1,128)S(1)}', space=vmem, size = 0x200, scoped, tag = 'scoped memory for _lambda_.1']
  %s0 = inlined_call_operand.vmem [shape: f32[32,2624], index: 0, kind: input, shape index: {}]
  %s1 = inlined_call_operand.vmem [shape: f32[32,8], index: 1, kind: input, shape index: {}]
  %s2 = inlined_call_operand.vmem [shape: f32[32,32], index: 2, kind: input, shape index: {}]
  %s3 = inlined_call_operand.vmem [shape: f32[32,32], index: 3, kind: input, shape index: {}]
  %s4 = inlined_call_operand.vmem [shape: f32[2,32], index: 4, kind: input, shape index: {}]
  %s5 = inlined_call_operand.vmem [shape: f32[2624,128], index: 5, kind: input, shape index: {}]
  %s6 = inlined_call_operand.vmem [shape: f32[1,128], index: 6, kind: input, shape index: {}]
  %s7 = inlined_call_operand.vmem [shape: f32[128,384], index: 7, kind: input, shape index: {}]
  %s8 = inlined_call_operand.vmem [shape: f32[8,384], index: 8, kind: input, shape index: {}]
  %s9 = inlined_call_operand.vmem [shape: f32[16,128], index: 9, kind: input, shape index: {}]
  %s10 = inlined_call_operand.<no memory space> [shape: f32[1,1], index: 10, kind: input, shape index: {}]
  %s11 = inlined_call_operand.vmem [shape: f32[2,1], index: 11, kind: output, shape index: {}]
  %s12 = sld [smem:[#allocation0]]
  $region54: #{_lambda_.1} parent=0
    _
  %s14 = ssub.s32 1, %s12
  %s15 = scalar_select 0, %s14, %s12
  %v16 = vstv %s10
  %17 = vst [vmem:[#allocation2] sm:$0x1] %v16
  // Predicated region
  $region2: #{_lambda_.1} parent=0 // pred_check
    _
  $region3: #{_lambda_.1} parent=0 // pred_check_branch
    %19 = sbr.rel (0) target = $region5
  $region4: #{_lambda_.1} parent=0 // pred_region
    _
  $region5: #{_lambda_.1} parent=0 // pred_fallthru
    _
  // Predicated region
  $region6: #{_lambda_.1} parent=0 // pred_check
    _
  $region7: #{_lambda_.1} parent=0 // pred_check_branch
    %21 = sbr.rel (0) target = $region9
  $region8: #{_lambda_.1} parent=0 // pred_region
    _
  $region9: #{_lambda_.1} parent=0 // pred_fallthru
    _
  // Predicated region
  $region10: #{_lambda_.1} parent=0 // pred_check
    _
  $region11: #{_lambda_.1} parent=0 // pred_check_branch
    %23 = sbr.rel (0) target = $region13
  $region12: #{_lambda_.1} parent=0 // pred_region
    _
  $region13: #{_lambda_.1} parent=0 // pred_fallthru
    _
  // Predicated region
  $region14: #{_lambda_.1} parent=0 // pred_check
    _
  $region15: #{_lambda_.1} parent=0 // pred_check_branch
    %25 = sbr.rel (0) target = $region17
  $region16: #{_lambda_.1} parent=0 // pred_region
    _
  $region17: #{_lambda_.1} parent=0 // pred_fallthru
    _
  // Predicated region
  $region18: #{_lambda_.1} parent=0 // pred_check
    _
  $region19: #{_lambda_.1} parent=0 // pred_check_branch
    %27 = sbr.rel (0) target = $region21
  $region20: #{_lambda_.1} parent=0 // pred_region
    _
  $region21: #{_lambda_.1} parent=0 // pred_fallthru
    _
  // Predicated region
  $region22: #{_lambda_.1} parent=0 // pred_check
    _
  $region23: #{_lambda_.1} parent=0 // pred_check_branch
    %29 = sbr.rel (0) target = $region25
  $region24: #{_lambda_.1} parent=0 // pred_region
    _
  $region25: #{_lambda_.1} parent=0 // pred_fallthru
    _
  // Predicated region
  $region26: #{_lambda_.1} parent=0 // pred_check
    _
  $region27: #{_lambda_.1} parent=0 // pred_check_branch
    %31 = sbr.rel (0) target = $region29
  $region28: #{_lambda_.1} parent=0 // pred_region
    _
  $region29: #{_lambda_.1} parent=0 // pred_fallthru
    _
  // Predicated region
  $region30: #{_lambda_.1} parent=0 // pred_check
    _
  $region31: #{_lambda_.1} parent=0 // pred_check_branch
    %33 = sbr.rel (0) target = $region33
  $region32: #{_lambda_.1} parent=0 // pred_region
    _
  $region33: #{_lambda_.1} parent=0 // pred_fallthru
    _
  // Predicated region
  $region34: #{_lambda_.1} parent=0 // pred_check
    _
  $region35: #{_lambda_.1} parent=0 // pred_check_branch
    %35 = sbr.rel (0) target = $region37
  $region36: #{_lambda_.1} parent=0 // pred_region
    _
  $region37: #{_lambda_.1} parent=0 // pred_fallthru
    _
  // Predicated region
  $region38: #{_lambda_.1} parent=0 // pred_check
    _
  $region39: #{_lambda_.1} parent=0 // pred_check_branch
    %37 = sbr.rel (0) target = $region41
  $region40: #{_lambda_.1} parent=0 // pred_region
    _
  $region41: #{_lambda_.1} parent=0 // pred_fallthru
    _
  // Predicated region
  $region42: #{_lambda_.1} parent=0 // pred_check
    _
  $region43: #{_lambda_.1} parent=0 // pred_check_branch
    %39 = sbr.rel (0) target = $region45
  $region44: #{_lambda_.1} parent=0 // pred_region
    _
  $region45: #{_lambda_.1} parent=0 // pred_fallthru
    _
  %v40 = vld [vmem:[%s0] sm:$0xff]
  %v41 = vld [vmem:[%s0 + $0x8] sm:$0xff]
  %v42 = vld [vmem:[%s0 + $0x10] sm:$0xff]
  %v43 = vld [vmem:[%s0 + $0x18] sm:$0xff]
  %v44 = vld [vmem:[%s0 + $0x20] sm:$0xff]
  %v45 = vld [vmem:[%s0 + $0x28] sm:$0xff]
  %v46 = vld [vmem:[%s0 + $0x30] sm:$0xff]
  %v47 = vld [vmem:[%s0 + $0x38] sm:$0xff]
  %v48 = vld [vmem:[%s0 + $0x40] sm:$0xff]
  %v49 = vld [vmem:[%s0 + $0x48] sm:$0xff]
  %v50 = vld [vmem:[%s0 + $0x50] sm:$0xff]
  %v51 = vld [vmem:[%s0 + $0x58] sm:$0xff]
  %v52 = vld [vmem:[%s0 + $0x60] sm:$0xff]
  %v53 = vld [vmem:[%s0 + $0x68] sm:$0xff]
  %v54 = vld [vmem:[%s0 + $0x70] sm:$0xff]
  %v55 = vld [vmem:[%s0 + $0x78] sm:$0xff]
  %v56 = vld [vmem:[%s0 + $0x80] sm:$0xff]
  %v57 = vld [vmem:[%s0 + $0x88] sm:$0xff]
  %v58 = vld [vmem:[%s0 + $0x90] sm:$0xff]
  %v59 = vld [vmem:[%s0 + $0x98] sm:$0xff]
  %v60 = vld [vmem:[%s0 + $0xa0] sm:$0xff]
  %v61 = vld [vmem:[%s0 + $0xa8] sm:$0xff]
  %v62 = vld [vmem:[%s0 + $0xb0] sm:$0xff]
  %v63 = vld [vmem:[%s0 + $0xb8] sm:$0xff]
  %v64 = vld [vmem:[%s0 + $0xc0] sm:$0xff]
  %v65 = vld [vmem:[%s0 + $0xc8] sm:$0xff]
  %v66 = vld [vmem:[%s0 + $0xd0] sm:$0xff]
  %v67 = vld [vmem:[%s0 + $0xd8] sm:$0xff]
  %v68 = vld [vmem:[%s0 + $0xe0] sm:$0xff]
  %v69 = vld [vmem:[%s0 + $0xe8] sm:$0xff]
  %v70 = vld [vmem:[%s0 + $0xf0] sm:$0xff]
  %v71 = vld [vmem:[%s0 + $0xf8] sm:$0xff]
  %v72 = vld [vmem:[%s0 + $0x100] sm:$0xff]
  %v73 = vld [vmem:[%s0 + $0x108] sm:$0xff]
  %v74 = vld [vmem:[%s0 + $0x110] sm:$0xff]
  %v75 = vld [vmem:[%s0 + $0x118] sm:$0xff]
  %v76 = vld [vmem:[%s0 + $0x120] sm:$0xff]
  %v77 = vld [vmem:[%s0 + $0x128] sm:$0xff]
  %v78 = vld [vmem:[%s0 + $0x130] sm:$0xff]
  %v79 = vld [vmem:[%s0 + $0x138] sm:$0xff]
  %v80 = vld [vmem:[%s0 + $0x140] sm:$0xff]
  %v81 = vld [vmem:[%s0 + $0x148] sm:$0xff]
  %v82 = vld [vmem:[%s0 + $0x150] sm:$0xff]
  %v83 = vld [vmem:[%s0 + $0x158] sm:$0xff]
  %v84 = vld [vmem:[%s0 + $0x160] sm:$0xff]
  %v85 = vld [vmem:[%s0 + $0x168] sm:$0xff]
  %v86 = vld [vmem:[%s0 + $0x170] sm:$0xff]
  %v87 = vld [vmem:[%s0 + $0x178] sm:$0xff]
  %v88 = vld [vmem:[%s0 + $0x180] sm:$0xff]
  %v89 = vld [vmem:[%s0 + $0x188] sm:$0xff]
  %v90 = vld [vmem:[%s0 + $0x190] sm:$0xff]
  %v91 = vld [vmem:[%s0 + $0x198] sm:$0xff]
  %v92 = vld [vmem:[%s0 + $0x1a0] sm:$0xff]
  %v93 = vld [vmem:[%s0 + $0x1a8] sm:$0xff]
  %v94 = vld [vmem:[%s0 + $0x1b0] sm:$0xff]
  %v95 = vld [vmem:[%s0 + $0x1b8] sm:$0xff]
  %v96 = vld [vmem:[%s0 + $0x1c0] sm:$0xff]
  %v97 = vld [vmem:[%s0 + $0x1c8] sm:$0xff]
  %v98 = vld [vmem:[%s0 + $0x1d0] sm:$0xff]
  %v99 = vld [vmem:[%s0 + $0x1d8] sm:$0xff]
  %v100 = vld [vmem:[%s0 + $0x1e0] sm:$0xff]
  %v101 = vld [vmem:[%s0 + $0x1e8] sm:$0xff]
  %v102 = vld [vmem:[%s0 + $0x1f0] sm:$0xff]
  %v103 = vld [vmem:[%s0 + $0x1f8] sm:$0xff]
  %v104 = vld [vmem:[%s0 + $0x200] sm:$0xff]
  %v105 = vld [vmem:[%s0 + $0x208] sm:$0xff]
  %v106 = vld [vmem:[%s0 + $0x210] sm:$0xff]
  %v107 = vld [vmem:[%s0 + $0x218] sm:$0xff]
  %v108 = vld [vmem:[%s0 + $0x220] sm:$0xff]
  %v109 = vld [vmem:[%s0 + $0x228] sm:$0xff]
  %v110 = vld [vmem:[%s0 + $0x230] sm:$0xff]
  %v111 = vld [vmem:[%s0 + $0x238] sm:$0xff]
  %v112 = vld [vmem:[%s0 + $0x240] sm:$0xff]
  %v113 = vld [vmem:[%s0 + $0x248] sm:$0xff]
  %v114 = vld [vmem:[%s0 + $0x250] sm:$0xff]
  %v115 = vld [vmem:[%s0 + $0x258] sm:$0xff]
  %v116 = vld [vmem:[%s0 + $0x260] sm:$0xff]
  %v117 = vld [vmem:[%s0 + $0x268] sm:$0xff]
  %v118 = vld [vmem:[%s0 + $0x270] sm:$0xff]
  %v119 = vld [vmem:[%s0 + $0x278] sm:$0xff]
  %v120 = vld [vmem:[%s0 + $0x280] sm:$0xff]
  %v121 = vld [vmem:[%s0 + $0x288] sm:$0xff]
  %v122 = vld [vmem:[%s0 + $0x290] sm:$0xff]
  %v123 = vld [vmem:[%s0 + $0x298] sm:$0xff]
  %v124 = vld [vmem:[%s5] sm:$0xff]
  %v125 = vld [vmem:[%s5 + $0x8] sm:$0xff]
  %v126 = vld [vmem:[%s5 + $0x10] sm:$0xff]
  %v127 = vld [vmem:[%s5 + $0x18] sm:$0xff]
  %v128 = vld [vmem:[%s5 + $0x20] sm:$0xff]
  %v129 = vld [vmem:[%s5 + $0x28] sm:$0xff]
  %v130 = vld [vmem:[%s5 + $0x30] sm:$0xff]
  %v131 = vld [vmem:[%s5 + $0x38] sm:$0xff]
  %v132 = vld [vmem:[%s5 + $0x40] sm:$0xff]
  %v133 = vld [vmem:[%s5 + $0x48] sm:$0xff]
  %v134 = vld [vmem:[%s5 + $0x50] sm:$0xff]
  %v135 = vld [vmem:[%s5 + $0x58] sm:$0xff]
  %v136 = vld [vmem:[%s5 + $0x60] sm:$0xff]
  %v137 = vld [vmem:[%s5 + $0x68] sm:$0xff]
  %v138 = vld [vmem:[%s5 + $0x70] sm:$0xff]
  %v139 = vld [vmem:[%s5 + $0x78] sm:$0xff]
  %v140 = vld [vmem:[%s5 + $0x80] sm:$0xff]
  %v141 = vld [vmem:[%s5 + $0x88] sm:$0xff]
  %v142 = vld [vmem:[%s5 + $0x90] sm:$0xff]
  %v143 = vld [vmem:[%s5 + $0x98] sm:$0xff]
  %v144 = vld [vmem:[%s5 + $0xa0] sm:$0xff]
  %v145 = vld [vmem:[%s5 + $0xa8] sm:$0xff]
  %v146 = vld [vmem:[%s5 + $0xb0] sm:$0xff]
  %v147 = vld [vmem:[%s5 + $0xb8] sm:$0xff]
  %v148 = vld [vmem:[%s5 + $0xc0] sm:$0xff]
  %v149 = vld [vmem:[%s5 + $0xc8] sm:$0xff]
  %v150 = vld [vmem:[%s5 + $0xd0] sm:$0xff]
  %v151 = vld [vmem:[%s5 + $0xd8] sm:$0xff]
  %v152 = vld [vmem:[%s5 + $0xe0] sm:$0xff]
  %v153 = vld [vmem:[%s5 + $0xe8] sm:$0xff]
  %v154 = vld [vmem:[%s5 + $0xf0] sm:$0xff]
  %v155 = vld [vmem:[%s5 + $0xf8] sm:$0xff]
  %v156 = vld [vmem:[%s5 + $0x100] sm:$0xff]
  %v157 = vld [vmem:[%s5 + $0x108] sm:$0xff]
  %v158 = vld [vmem:[%s5 + $0x110] sm:$0xff]
  %v159 = vld [vmem:[%s5 + $0x118] sm:$0xff]
  %v160 = vld [vmem:[%s5 + $0x120] sm:$0xff]
  %v161 = vld [vmem:[%s5 + $0x128] sm:$0xff]
  %v162 = vld [vmem:[%s5 + $0x130] sm:$0xff]
  %v163 = vld [vmem:[%s5 + $0x138] sm:$0xff]
  %v164 = vld [vmem:[%s5 + $0x140] sm:$0xff]
  %v165 = vld [vmem:[%s5 + $0x148] sm:$0xff]
  %v166 = vld [vmem:[%s5 + $0x150] sm:$0xff]
  %v167 = vld [vmem:[%s5 + $0x158] sm:$0xff]
  %v168 = vld [vmem:[%s5 + $0x160] sm:$0xff]
  %v169 = vld [vmem:[%s5 + $0x168] sm:$0xff]
  %v170 = vld [vmem:[%s5 + $0x170] sm:$0xff]
  %v171 = vld [vmem:[%s5 + $0x178] sm:$0xff]
  %v172 = vld [vmem:[%s5 + $0x180] sm:$0xff]
  %v173 = vld [vmem:[%s5 + $0x188] sm:$0xff]
  %v174 = vld [vmem:[%s5 + $0x190] sm:$0xff]
  %v175 = vld [vmem:[%s5 + $0x198] sm:$0xff]
  %v176 = vld [vmem:[%s5 + $0x1a0] sm:$0xff]
  %v177 = vld [vmem:[%s5 + $0x1a8] sm:$0xff]
  %v178 = vld [vmem:[%s5 + $0x1b0] sm:$0xff]
  %v179 = vld [vmem:[%s5 + $0x1b8] sm:$0xff]
  %v180 = vld [vmem:[%s5 + $0x1c0] sm:$0xff]
  %v181 = vld [vmem:[%s5 + $0x1c8] sm:$0xff]
  %v182 = vld [vmem:[%s5 + $0x1d0] sm:$0xff]
  %v183 = vld [vmem:[%s5 + $0x1d8] sm:$0xff]
  %v184 = vld [vmem:[%s5 + $0x1e0] sm:$0xff]
  %v185 = vld [vmem:[%s5 + $0x1e8] sm:$0xff]
  %v186 = vld [vmem:[%s5 + $0x1f0] sm:$0xff]
  %v187 = vld [vmem:[%s5 + $0x1f8] sm:$0xff]
  %v188 = vld [vmem:[%s5 + $0x200] sm:$0xff]
  %v189 = vld [vmem:[%s5 + $0x208] sm:$0xff]
  %v190 = vld [vmem:[%s5 + $0x210] sm:$0xff]
  %v191 = vld [vmem:[%s5 + $0x218] sm:$0xff]
  %v192 = vld [vmem:[%s5 + $0x220] sm:$0xff]
  %v193 = vld [vmem:[%s5 + $0x228] sm:$0xff]
  %v194 = vld [vmem:[%s5 + $0x230] sm:$0xff]
  %v195 = vld [vmem:[%s5 + $0x238] sm:$0xff]
  %v196 = vld [vmem:[%s5 + $0x240] sm:$0xff]
  %v197 = vld [vmem:[%s5 + $0x248] sm:$0xff]
  %v198 = vld [vmem:[%s5 + $0x250] sm:$0xff]
  %v199 = vld [vmem:[%s5 + $0x258] sm:$0xff]
  %v200 = vld [vmem:[%s5 + $0x260] sm:$0xff]
  %v201 = vld [vmem:[%s5 + $0x268] sm:$0xff]
  %v202 = vld [vmem:[%s5 + $0x270] sm:$0xff]
  %v203 = vld [vmem:[%s5 + $0x278] sm:$0xff]
  %v204 = vld [vmem:[%s5 + $0x280] sm:$0xff]
  %v205 = vld [vmem:[%s5 + $0x288] sm:$0xff]
  %v206 = vld [vmem:[%s5 + $0x290] sm:$0xff]
  %v207 = vld [vmem:[%s5 + $0x298] sm:$0xff]
  %v208 = vld [vmem:[%s5 + $0x2a0] sm:$0xff]
  %v209 = vld [vmem:[%s5 + $0x2a8] sm:$0xff]
  %v210 = vld [vmem:[%s5 + $0x2b0] sm:$0xff]
  %v211 = vld [vmem:[%s5 + $0x2b8] sm:$0xff]
  %v212 = vld [vmem:[%s5 + $0x2c0] sm:$0xff]
  %v213 = vld [vmem:[%s5 + $0x2c8] sm:$0xff]
  %v214 = vld [vmem:[%s5 + $0x2d0] sm:$0xff]
  %v215 = vld [vmem:[%s5 + $0x2d8] sm:$0xff]
  %v216 = vld [vmem:[%s5 + $0x2e0] sm:$0xff]
  %v217 = vld [vmem:[%s5 + $0x2e8] sm:$0xff]
  %v218 = vld [vmem:[%s5 + $0x2f0] sm:$0xff]
  %v219 = vld [vmem:[%s5 + $0x2f8] sm:$0xff]
  %v220 = vld [vmem:[%s5 + $0x300] sm:$0xff]
  %v221 = vld [vmem:[%s5 + $0x308] sm:$0xff]
  %v222 = vld [vmem:[%s5 + $0x310] sm:$0xff]
  %v223 = vld [vmem:[%s5 + $0x318] sm:$0xff]
  %v224 = vld [vmem:[%s5 + $0x320] sm:$0xff]
  %v225 = vld [vmem:[%s5 + $0x328] sm:$0xff]
  %v226 = vld [vmem:[%s5 + $0x330] sm:$0xff]
  %v227 = vld [vmem:[%s5 + $0x338] sm:$0xff]
  %v228 = vld [vmem:[%s5 + $0x340] sm:$0xff]
  %v229 = vld [vmem:[%s5 + $0x348] sm:$0xff]
  %v230 = vld [vmem:[%s5 + $0x350] sm:$0xff]
  %v231 = vld [vmem:[%s5 + $0x358] sm:$0xff]
  %v232 = vld [vmem:[%s5 + $0x360] sm:$0xff]
  %v233 = vld [vmem:[%s5 + $0x368] sm:$0xff]
  %v234 = vld [vmem:[%s5 + $0x370] sm:$0xff]
  %v235 = vld [vmem:[%s5 + $0x378] sm:$0xff]
  %v236 = vld [vmem:[%s5 + $0x380] sm:$0xff]
  %v237 = vld [vmem:[%s5 + $0x388] sm:$0xff]
  %v238 = vld [vmem:[%s5 + $0x390] sm:$0xff]
  %v239 = vld [vmem:[%s5 + $0x398] sm:$0xff]
  %v240 = vld [vmem:[%s5 + $0x3a0] sm:$0xff]
  %v241 = vld [vmem:[%s5 + $0x3a8] sm:$0xff]
  %v242 = vld [vmem:[%s5 + $0x3b0] sm:$0xff]
  %v243 = vld [vmem:[%s5 + $0x3b8] sm:$0xff]
  %v244 = vld [vmem:[%s5 + $0x3c0] sm:$0xff]
  %v245 = vld [vmem:[%s5 + $0x3c8] sm:$0xff]
  %v246 = vld [vmem:[%s5 + $0x3d0] sm:$0xff]
  %v247 = vld [vmem:[%s5 + $0x3d8] sm:$0xff]
  %v248 = vld [vmem:[%s5 + $0x3e0] sm:$0xff]
  %v249 = vld [vmem:[%s5 + $0x3e8] sm:$0xff]
  %v250 = vld [vmem:[%s5 + $0x3f0] sm:$0xff]
  %v251 = vld [vmem:[%s5 + $0x3f8] sm:$0xff]
  %v252 = vld [vmem:[%s5 + $0x400] sm:$0xff]
  %v253 = vld [vmem:[%s5 + $0x408] sm:$0xff]
  %v254 = vld [vmem:[%s5 + $0x410] sm:$0xff]
  %v255 = vld [vmem:[%s5 + $0x418] sm:$0xff]
  %v256 = vld [vmem:[%s5 + $0x420] sm:$0xff]
  %v257 = vld [vmem:[%s5 + $0x428] sm:$0xff]
  %v258 = vld [vmem:[%s5 + $0x430] sm:$0xff]
  %v259 = vld [vmem:[%s5 + $0x438] sm:$0xff]
  %v260 = vld [vmem:[%s5 + $0x440] sm:$0xff]
  %v261 = vld [vmem:[%s5 + $0x448] sm:$0xff]
  %v262 = vld [vmem:[%s5 + $0x450] sm:$0xff]
  %v263 = vld [vmem:[%s5 + $0x458] sm:$0xff]
  %v264 = vld [vmem:[%s5 + $0x460] sm:$0xff]
  %v265 = vld [vmem:[%s5 + $0x468] sm:$0xff]
  %v266 = vld [vmem:[%s5 + $0x470] sm:$0xff]
  %v267 = vld [vmem:[%s5 + $0x478] sm:$0xff]
  %v268 = vld [vmem:[%s5 + $0x480] sm:$0xff]
  %v269 = vld [vmem:[%s5 + $0x488] sm:$0xff]
  %v270 = vld [vmem:[%s5 + $0x490] sm:$0xff]
  %v271 = vld [vmem:[%s5 + $0x498] sm:$0xff]
  %v272 = vld [vmem:[%s5 + $0x4a0] sm:$0xff]
  %v273 = vld [vmem:[%s5 + $0x4a8] sm:$0xff]
  %v274 = vld [vmem:[%s5 + $0x4b0] sm:$0xff]
  %v275 = vld [vmem:[%s5 + $0x4b8] sm:$0xff]
  %v276 = vld [vmem:[%s5 + $0x4c0] sm:$0xff]
  %v277 = vld [vmem:[%s5 + $0x4c8] sm:$0xff]
  %v278 = vld [vmem:[%s5 + $0x4d0] sm:$0xff]
  %v279 = vld [vmem:[%s5 + $0x4d8] sm:$0xff]
  %v280 = vld [vmem:[%s5 + $0x4e0] sm:$0xff]
  %v281 = vld [vmem:[%s5 + $0x4e8] sm:$0xff]
  %v282 = vld [vmem:[%s5 + $0x4f0] sm:$0xff]
  %v283 = vld [vmem:[%s5 + $0x4f8] sm:$0xff]
  %v284 = vld [vmem:[%s5 + $0x500] sm:$0xff]
  %v285 = vld [vmem:[%s5 + $0x508] sm:$0xff]
  %v286 = vld [vmem:[%s5 + $0x510] sm:$0xff]
  %v287 = vld [vmem:[%s5 + $0x518] sm:$0xff]
  %v288 = vld [vmem:[%s5 + $0x520] sm:$0xff]
  %v289 = vld [vmem:[%s5 + $0x528] sm:$0xff]
  %v290 = vld [vmem:[%s5 + $0x530] sm:$0xff]
  %v291 = vld [vmem:[%s5 + $0x538] sm:$0xff]
  %v292 = vld [vmem:[%s5 + $0x540] sm:$0xff]
  %v293 = vld [vmem:[%s5 + $0x548] sm:$0xff]
  %v294 = vld [vmem:[%s5 + $0x550] sm:$0xff]
  %v295 = vld [vmem:[%s5 + $0x558] sm:$0xff]
  %v296 = vld [vmem:[%s5 + $0x560] sm:$0xff]
  %v297 = vld [vmem:[%s5 + $0x568] sm:$0xff]
  %v298 = vld [vmem:[%s5 + $0x570] sm:$0xff]
  %v299 = vld [vmem:[%s5 + $0x578] sm:$0xff]
  %v300 = vld [vmem:[%s5 + $0x580] sm:$0xff]
  %v301 = vld [vmem:[%s5 + $0x588] sm:$0xff]
  %v302 = vld [vmem:[%s5 + $0x590] sm:$0xff]
  %v303 = vld [vmem:[%s5 + $0x598] sm:$0xff]
  %v304 = vld [vmem:[%s5 + $0x5a0] sm:$0xff]
  %v305 = vld [vmem:[%s5 + $0x5a8] sm:$0xff]
  %v306 = vld [vmem:[%s5 + $0x5b0] sm:$0xff]
  %v307 = vld [vmem:[%s5 + $0x5b8] sm:$0xff]
  %v308 = vld [vmem:[%s5 + $0x5c0] sm:$0xff]
  %v309 = vld [vmem:[%s5 + $0x5c8] sm:$0xff]
  %v310 = vld [vmem:[%s5 + $0x5d0] sm:$0xff]
  %v311 = vld [vmem:[%s5 + $0x5d8] sm:$0xff]
  %v312 = vld [vmem:[%s5 + $0x5e0] sm:$0xff]
  %v313 = vld [vmem:[%s5 + $0x5e8] sm:$0xff]
  %v314 = vld [vmem:[%s5 + $0x5f0] sm:$0xff]
  %v315 = vld [vmem:[%s5 + $0x5f8] sm:$0xff]
  %v316 = vld [vmem:[%s5 + $0x600] sm:$0xff]
  %v317 = vld [vmem:[%s5 + $0x608] sm:$0xff]
  %v318 = vld [vmem:[%s5 + $0x610] sm:$0xff]
  %v319 = vld [vmem:[%s5 + $0x618] sm:$0xff]
  %v320 = vld [vmem:[%s5 + $0x620] sm:$0xff]
  %v321 = vld [vmem:[%s5 + $0x628] sm:$0xff]
  %v322 = vld [vmem:[%s5 + $0x630] sm:$0xff]
  %v323 = vld [vmem:[%s5 + $0x638] sm:$0xff]
  %v324 = vld [vmem:[%s5 + $0x640] sm:$0xff]
  %v325 = vld [vmem:[%s5 + $0x648] sm:$0xff]
  %v326 = vld [vmem:[%s5 + $0x650] sm:$0xff]
  %v327 = vld [vmem:[%s5 + $0x658] sm:$0xff]
  %v328 = vld [vmem:[%s5 + $0x660] sm:$0xff]
  %v329 = vld [vmem:[%s5 + $0x668] sm:$0xff]
  %v330 = vld [vmem:[%s5 + $0x670] sm:$0xff]
  %v331 = vld [vmem:[%s5 + $0x678] sm:$0xff]
  %v332 = vld [vmem:[%s5 + $0x680] sm:$0xff]
  %v333 = vld [vmem:[%s5 + $0x688] sm:$0xff]
  %v334 = vld [vmem:[%s5 + $0x690] sm:$0xff]
  %v335 = vld [vmem:[%s5 + $0x698] sm:$0xff]
  %v336 = vld [vmem:[%s5 + $0x6a0] sm:$0xff]
  %v337 = vld [vmem:[%s5 + $0x6a8] sm:$0xff]
  %v338 = vld [vmem:[%s5 + $0x6b0] sm:$0xff]
  %v339 = vld [vmem:[%s5 + $0x6b8] sm:$0xff]
  %v340 = vld [vmem:[%s5 + $0x6c0] sm:$0xff]
  %v341 = vld [vmem:[%s5 + $0x6c8] sm:$0xff]
  %v342 = vld [vmem:[%s5 + $0x6d0] sm:$0xff]
  %v343 = vld [vmem:[%s5 + $0x6d8] sm:$0xff]
  %v344 = vld [vmem:[%s5 + $0x6e0] sm:$0xff]
  %v345 = vld [vmem:[%s5 + $0x6e8] sm:$0xff]
  %v346 = vld [vmem:[%s5 + $0x6f0] sm:$0xff]
  %v347 = vld [vmem:[%s5 + $0x6f8] sm:$0xff]
  %v348 = vld [vmem:[%s5 + $0x700] sm:$0xff]
  %v349 = vld [vmem:[%s5 + $0x708] sm:$0xff]
  %v350 = vld [vmem:[%s5 + $0x710] sm:$0xff]
  %v351 = vld [vmem:[%s5 + $0x718] sm:$0xff]
  %v352 = vld [vmem:[%s5 + $0x720] sm:$0xff]
  %v353 = vld [vmem:[%s5 + $0x728] sm:$0xff]
  %v354 = vld [vmem:[%s5 + $0x730] sm:$0xff]
  %v355 = vld [vmem:[%s5 + $0x738] sm:$0xff]
  %v356 = vld [vmem:[%s5 + $0x740] sm:$0xff]
  %v357 = vld [vmem:[%s5 + $0x748] sm:$0xff]
  %v358 = vld [vmem:[%s5 + $0x750] sm:$0xff]
  %v359 = vld [vmem:[%s5 + $0x758] sm:$0xff]
  %v360 = vld [vmem:[%s5 + $0x760] sm:$0xff]
  %v361 = vld [vmem:[%s5 + $0x768] sm:$0xff]
  %v362 = vld [vmem:[%s5 + $0x770] sm:$0xff]
  %v363 = vld [vmem:[%s5 + $0x778] sm:$0xff]
  %v364 = vld [vmem:[%s5 + $0x780] sm:$0xff]
  %v365 = vld [vmem:[%s5 + $0x788] sm:$0xff]
  %v366 = vld [vmem:[%s5 + $0x790] sm:$0xff]
  %v367 = vld [vmem:[%s5 + $0x798] sm:$0xff]
  %v368 = vld [vmem:[%s5 + $0x7a0] sm:$0xff]
  %v369 = vld [vmem:[%s5 + $0x7a8] sm:$0xff]
  %v370 = vld [vmem:[%s5 + $0x7b0] sm:$0xff]
  %v371 = vld [vmem:[%s5 + $0x7b8] sm:$0xff]
  %v372 = vld [vmem:[%s5 + $0x7c0] sm:$0xff]
  %v373 = vld [vmem:[%s5 + $0x7c8] sm:$0xff]
  %v374 = vld [vmem:[%s5 + $0x7d0] sm:$0xff]
  %v375 = vld [vmem:[%s5 + $0x7d8] sm:$0xff]
  %v376 = vld [vmem:[%s5 + $0x7e0] sm:$0xff]
  %v377 = vld [vmem:[%s5 + $0x7e8] sm:$0xff]
  %v378 = vld [vmem:[%s5 + $0x7f0] sm:$0xff]
  %v379 = vld [vmem:[%s5 + $0x7f8] sm:$0xff]
  %v380 = vld [vmem:[%s5 + $0x800] sm:$0xff]
  %v381 = vld [vmem:[%s5 + $0x808] sm:$0xff]
  %v382 = vld [vmem:[%s5 + $0x810] sm:$0xff]
  %v383 = vld [vmem:[%s5 + $0x818] sm:$0xff]
  %v384 = vld [vmem:[%s5 + $0x820] sm:$0xff]
  %v385 = vld [vmem:[%s5 + $0x828] sm:$0xff]
  %v386 = vld [vmem:[%s5 + $0x830] sm:$0xff]
  %v387 = vld [vmem:[%s5 + $0x838] sm:$0xff]
  %v388 = vld [vmem:[%s5 + $0x840] sm:$0xff]
  %v389 = vld [vmem:[%s5 + $0x848] sm:$0xff]
  %v390 = vld [vmem:[%s5 + $0x850] sm:$0xff]
  %v391 = vld [vmem:[%s5 + $0x858] sm:$0xff]
  %v392 = vld [vmem:[%s5 + $0x860] sm:$0xff]
  %v393 = vld [vmem:[%s5 + $0x868] sm:$0xff]
  %v394 = vld [vmem:[%s5 + $0x870] sm:$0xff]
  %v395 = vld [vmem:[%s5 + $0x878] sm:$0xff]
  %v396 = vld [vmem:[%s5 + $0x880] sm:$0xff]
  %v397 = vld [vmem:[%s5 + $0x888] sm:$0xff]
  %v398 = vld [vmem:[%s5 + $0x890] sm:$0xff]
  %v399 = vld [vmem:[%s5 + $0x898] sm:$0xff]
  %v400 = vld [vmem:[%s5 + $0x8a0] sm:$0xff]
  %v401 = vld [vmem:[%s5 + $0x8a8] sm:$0xff]
  %v402 = vld [vmem:[%s5 + $0x8b0] sm:$0xff]
  %v403 = vld [vmem:[%s5 + $0x8b8] sm:$0xff]
  %v404 = vld [vmem:[%s5 + $0x8c0] sm:$0xff]
  %v405 = vld [vmem:[%s5 + $0x8c8] sm:$0xff]
  %v406 = vld [vmem:[%s5 + $0x8d0] sm:$0xff]
  %v407 = vld [vmem:[%s5 + $0x8d8] sm:$0xff]
  %v408 = vld [vmem:[%s5 + $0x8e0] sm:$0xff]
  %v409 = vld [vmem:[%s5 + $0x8e8] sm:$0xff]
  %v410 = vld [vmem:[%s5 + $0x8f0] sm:$0xff]
  %v411 = vld [vmem:[%s5 + $0x8f8] sm:$0xff]
  %v412 = vld [vmem:[%s5 + $0x900] sm:$0xff]
  %v413 = vld [vmem:[%s5 + $0x908] sm:$0xff]
  %v414 = vld [vmem:[%s5 + $0x910] sm:$0xff]
  %v415 = vld [vmem:[%s5 + $0x918] sm:$0xff]
  %v416 = vld [vmem:[%s5 + $0x920] sm:$0xff]
  %v417 = vld [vmem:[%s5 + $0x928] sm:$0xff]
  %v418 = vld [vmem:[%s5 + $0x930] sm:$0xff]
  %v419 = vld [vmem:[%s5 + $0x938] sm:$0xff]
  %v420 = vld [vmem:[%s5 + $0x940] sm:$0xff]
  %v421 = vld [vmem:[%s5 + $0x948] sm:$0xff]
  %v422 = vld [vmem:[%s5 + $0x950] sm:$0xff]
  %v423 = vld [vmem:[%s5 + $0x958] sm:$0xff]
  %v424 = vld [vmem:[%s5 + $0x960] sm:$0xff]
  %v425 = vld [vmem:[%s5 + $0x968] sm:$0xff]
  %v426 = vld [vmem:[%s5 + $0x970] sm:$0xff]
  %v427 = vld [vmem:[%s5 + $0x978] sm:$0xff]
  %v428 = vld [vmem:[%s5 + $0x980] sm:$0xff]
  %v429 = vld [vmem:[%s5 + $0x988] sm:$0xff]
  %v430 = vld [vmem:[%s5 + $0x990] sm:$0xff]
  %v431 = vld [vmem:[%s5 + $0x998] sm:$0xff]
  %v432 = vld [vmem:[%s5 + $0x9a0] sm:$0xff]
  %v433 = vld [vmem:[%s5 + $0x9a8] sm:$0xff]
  %v434 = vld [vmem:[%s5 + $0x9b0] sm:$0xff]
  %v435 = vld [vmem:[%s5 + $0x9b8] sm:$0xff]
  %v436 = vld [vmem:[%s5 + $0x9c0] sm:$0xff]
  %v437 = vld [vmem:[%s5 + $0x9c8] sm:$0xff]
  %v438 = vld [vmem:[%s5 + $0x9d0] sm:$0xff]
  %v439 = vld [vmem:[%s5 + $0x9d8] sm:$0xff]
  %v440 = vld [vmem:[%s5 + $0x9e0] sm:$0xff]
  %v441 = vld [vmem:[%s5 + $0x9e8] sm:$0xff]
  %v442 = vld [vmem:[%s5 + $0x9f0] sm:$0xff]
  %v443 = vld [vmem:[%s5 + $0x9f8] sm:$0xff]
  %v444 = vld [vmem:[%s5 + $0xa00] sm:$0xff]
  %v445 = vld [vmem:[%s5 + $0xa08] sm:$0xff]
  %v446 = vld [vmem:[%s5 + $0xa10] sm:$0xff]
  %v447 = vld [vmem:[%s5 + $0xa18] sm:$0xff]
  %v448 = vld [vmem:[%s5 + $0xa20] sm:$0xff]
  %v449 = vld [vmem:[%s5 + $0xa28] sm:$0xff]
  %v450 = vld [vmem:[%s5 + $0xa30] sm:$0xff]
  %v451 = vld [vmem:[%s5 + $0xa38] sm:$0xff]
  %v452 = vld [vmem:[%s6] sm:$0x1]
  %v454 = vperm.slane %v452, 0
  %vm456 = vcmask 523264
  %v458 = vsel %vm456, %v60, 0
  %v461 = vsel %vm456, %v81, 0
  %v464 = vsel %vm456, %v102, 0
  %v467 = vsel %vm456, %v123, 0
  %469 = vmatpush.msra.mxu0 %v139
  %470 = vmatpush.msra.mxu0 %v138
  %471 = vmatpush.msra.mxu0 %v137
  %472 = vmatpush.msra.mxu0 %v136
  %473 = vmatpush.msra.mxu0 %v135
  %474 = vmatpush.msra.mxu0 %v134
  %475 = vmatpush.msra.mxu0 %v133
  %476 = vmatpush.msra.mxu0 %v132
  %477 = vmatpush.msra.mxu0 %v131
  %478 = vmatpush.msra.mxu0 %v130
  %479 = vmatpush.msra.mxu0 %v129
  %480 = vmatpush.msra.mxu0 %v128
  %481 = vmatpush.msra.mxu0 %v127
  %482 = vmatpush.msra.mxu0 %v126
  %483 = vmatpush.msra.mxu0 %v125
  %484 = vmatpush.msra.mxu0 %v124
  %485 = vmatmul.f32.gmra.mxu0 %v40
  %v486 = vpop.f32.mrf.mxu0
  %v487 = vadd.f32 %v454, %v486
  %488 = vmatmul.f32.gmra.mxu0 %v61
  %v489 = vpop.f32.mrf.mxu0
  %v490 = vadd.f32 %v454, %v489
  %491 = vmatmul.f32.gmra.mxu0 %v82
  %v492 = vpop.f32.mrf.mxu0
  %v493 = vadd.f32 %v454, %v492
  %494 = vmatmul.f32.gmra.mxu0 %v103
  %v495 = vpop.f32.mrf.mxu0
  %v496 = vadd.f32 %v454, %v495
  %497 = vdwg.mxu0
  %498 = vmatpush.msra.mxu0 %v155
  %499 = vmatpush.msra.mxu0 %v154
  %500 = vmatpush.msra.mxu0 %v153
  %501 = vmatpush.msra.mxu0 %v152
  %502 = vmatpush.msra.mxu0 %v151
  %503 = vmatpush.msra.mxu0 %v150
  %504 = vmatpush.msra.mxu0 %v149
  %505 = vmatpush.msra.mxu0 %v148
  %506 = vmatpush.msra.mxu0 %v147
  %507 = vmatpush.msra.mxu0 %v146
  %508 = vmatpush.msra.mxu0 %v145
  %509 = vmatpush.msra.mxu0 %v144
  %510 = vmatpush.msra.mxu0 %v143
  %511 = vmatpush.msra.mxu0 %v142
  %512 = vmatpush.msra.mxu0 %v141
  %513 = vmatpush.msra.mxu0 %v140
  %514 = vmatmul.f32.gmra.mxu0 %v41
  %v515 = vpop.f32.mrf.mxu0
  %v516 = vadd.f32 %v487, %v515
  %517 = vmatmul.f32.gmra.mxu0 %v62
  %v518 = vpop.f32.mrf.mxu0
  %v519 = vadd.f32 %v490, %v518
  %520 = vmatmul.f32.gmra.mxu0 %v83
  %v521 = vpop.f32.mrf.mxu0
  %v522 = vadd.f32 %v493, %v521
  %523 = vmatmul.f32.gmra.mxu0 %v104
  %v524 = vpop.f32.mrf.mxu0
  %v525 = vadd.f32 %v496, %v524
  %526 = vdwg.mxu0
  %527 = vmatpush.msra.mxu0 %v171
  %528 = vmatpush.msra.mxu0 %v170
  %529 = vmatpush.msra.mxu0 %v169
  %530 = vmatpush.msra.mxu0 %v168
  %531 = vmatpush.msra.mxu0 %v167
  %532 = vmatpush.msra.mxu0 %v166
  %533 = vmatpush.msra.mxu0 %v165
  %534 = vmatpush.msra.mxu0 %v164
  %535 = vmatpush.msra.mxu0 %v163
  %536 = vmatpush.msra.mxu0 %v162
  %537 = vmatpush.msra.mxu0 %v161
  %538 = vmatpush.msra.mxu0 %v160
  %539 = vmatpush.msra.mxu0 %v159
  %540 = vmatpush.msra.mxu0 %v158
  %541 = vmatpush.msra.mxu0 %v157
  %542 = vmatpush.msra.mxu0 %v156
  %543 = vmatmul.f32.gmra.mxu0 %v42
  %v544 = vpop.f32.mrf.mxu0
  %v545 = vadd.f32 %v516, %v544
  %546 = vmatmul.f32.gmra.mxu0 %v63
  %v547 = vpop.f32.mrf.mxu0
  %v548 = vadd.f32 %v519, %v547
  %549 = vmatmul.f32.gmra.mxu0 %v84
  %v550 = vpop.f32.mrf.mxu0
  %v551 = vadd.f32 %v522, %v550
  %552 = vmatmul.f32.gmra.mxu0 %v105
  %v553 = vpop.f32.mrf.mxu0
  %v554 = vadd.f32 %v525, %v553
  %555 = vdwg.mxu0
  %556 = vmatpush.msra.mxu0 %v187
  %557 = vmatpush.msra.mxu0 %v186
  %558 = vmatpush.msra.mxu0 %v185
  %559 = vmatpush.msra.mxu0 %v184
  %560 = vmatpush.msra.mxu0 %v183
  %561 = vmatpush.msra.mxu0 %v182
  %562 = vmatpush.msra.mxu0 %v181
  %563 = vmatpush.msra.mxu0 %v180
  %564 = vmatpush.msra.mxu0 %v179
  %565 = vmatpush.msra.mxu0 %v178
  %566 = vmatpush.msra.mxu0 %v177
  %567 = vmatpush.msra.mxu0 %v176
  %568 = vmatpush.msra.mxu0 %v175
  %569 = vmatpush.msra.mxu0 %v174
  %570 = vmatpush.msra.mxu0 %v173
  %571 = vmatpush.msra.mxu0 %v172
  %572 = vmatmul.f32.gmra.mxu0 %v43
  %v573 = vpop.f32.mrf.mxu0
  %v574 = vadd.f32 %v545, %v573
  %575 = vmatmul.f32.gmra.mxu0 %v64
  %v576 = vpop.f32.mrf.mxu0
  %v577 = vadd.f32 %v548, %v576
  %578 = vmatmul.f32.gmra.mxu0 %v85
  %v579 = vpop.f32.mrf.mxu0
  %v580 = vadd.f32 %v551, %v579
  %581 = vmatmul.f32.gmra.mxu0 %v106
  %v582 = vpop.f32.mrf.mxu0
  %v583 = vadd.f32 %v554, %v582
  %584 = vdwg.mxu0
  %585 = vmatpush.msra.mxu0 %v203
  %586 = vmatpush.msra.mxu0 %v202
  %587 = vmatpush.msra.mxu0 %v201
  %588 = vmatpush.msra.mxu0 %v200
  %589 = vmatpush.msra.mxu0 %v199
  %590 = vmatpush.msra.mxu0 %v198
  %591 = vmatpush.msra.mxu0 %v197
  %592 = vmatpush.msra.mxu0 %v196
  %593 = vmatpush.msra.mxu0 %v195
  %594 = vmatpush.msra.mxu0 %v194
  %595 = vmatpush.msra.mxu0 %v193
  %596 = vmatpush.msra.mxu0 %v192
  %597 = vmatpush.msra.mxu0 %v191
  %598 = vmatpush.msra.mxu0 %v190
  %599 = vmatpush.msra.mxu0 %v189
  %600 = vmatpush.msra.mxu0 %v188
  %601 = vmatmul.f32.gmra.mxu0 %v44
  %v602 = vpop.f32.mrf.mxu0
  %v603 = vadd.f32 %v574, %v602
  %604 = vmatmul.f32.gmra.mxu0 %v65
  %v605 = vpop.f32.mrf.mxu0
  %v606 = vadd.f32 %v577, %v605
  %607 = vmatmul.f32.gmra.mxu0 %v86
  %v608 = vpop.f32.mrf.mxu0
  %v609 = vadd.f32 %v580, %v608
  %610 = vmatmul.f32.gmra.mxu0 %v107
  %v611 = vpop.f32.mrf.mxu0
  %v612 = vadd.f32 %v583, %v611
  %613 = vdwg.mxu0
  %614 = vmatpush.msra.mxu0 %v219
  %615 = vmatpush.msra.mxu0 %v218
  %616 = vmatpush.msra.mxu0 %v217
  %617 = vmatpush.msra.mxu0 %v216
  %618 = vmatpush.msra.mxu0 %v215
  %619 = vmatpush.msra.mxu0 %v214
  %620 = vmatpush.msra.mxu0 %v213
  %621 = vmatpush.msra.mxu0 %v212
  %622 = vmatpush.msra.mxu0 %v211
  %623 = vmatpush.msra.mxu0 %v210
  %624 = vmatpush.msra.mxu0 %v209
  %625 = vmatpush.msra.mxu0 %v208
  %626 = vmatpush.msra.mxu0 %v207
  %627 = vmatpush.msra.mxu0 %v206
  %628 = vmatpush.msra.mxu0 %v205
  %629 = vmatpush.msra.mxu0 %v204
  %630 = vmatmul.f32.gmra.mxu0 %v45
  %v631 = vpop.f32.mrf.mxu0
  %v632 = vadd.f32 %v603, %v631
  %633 = vmatmul.f32.gmra.mxu0 %v66
  %v634 = vpop.f32.mrf.mxu0
  %v635 = vadd.f32 %v606, %v634
  %636 = vmatmul.f32.gmra.mxu0 %v87
  %v637 = vpop.f32.mrf.mxu0
  %v638 = vadd.f32 %v609, %v637
  %639 = vmatmul.f32.gmra.mxu0 %v108
  %v640 = vpop.f32.mrf.mxu0
  %v641 = vadd.f32 %v612, %v640
  %642 = vdwg.mxu0
  %643 = vmatpush.msra.mxu0 %v235
  %644 = vmatpush.msra.mxu0 %v234
  %645 = vmatpush.msra.mxu0 %v233
  %646 = vmatpush.msra.mxu0 %v232
  %647 = vmatpush.msra.mxu0 %v231
  %648 = vmatpush.msra.mxu0 %v230
  %649 = vmatpush.msra.mxu0 %v229
  %650 = vmatpush.msra.mxu0 %v228
  %651 = vmatpush.msra.mxu0 %v227
  %652 = vmatpush.msra.mxu0 %v226
  %653 = vmatpush.msra.mxu0 %v225
  %654 = vmatpush.msra.mxu0 %v224
  %655 = vmatpush.msra.mxu0 %v223
  %656 = vmatpush.msra.mxu0 %v222
  %657 = vmatpush.msra.mxu0 %v221
  %658 = vmatpush.msra.mxu0 %v220
  %659 = vmatmul.f32.gmra.mxu0 %v46
  %v660 = vpop.f32.mrf.mxu0
  %v661 = vadd.f32 %v632, %v660
  %662 = vmatmul.f32.gmra.mxu0 %v67
  %v663 = vpop.f32.mrf.mxu0
  %v664 = vadd.f32 %v635, %v663
  %665 = vmatmul.f32.gmra.mxu0 %v88
  %v666 = vpop.f32.mrf.mxu0
  %v667 = vadd.f32 %v638, %v666
  %668 = vmatmul.f32.gmra.mxu0 %v109
  %v669 = vpop.f32.mrf.mxu0
  %v670 = vadd.f32 %v641, %v669
  %671 = vdwg.mxu0
  %672 = vmatpush.msra.mxu0 %v251
  %673 = vmatpush.msra.mxu0 %v250
  %674 = vmatpush.msra.mxu0 %v249
  %675 = vmatpush.msra.mxu0 %v248
  %676 = vmatpush.msra.mxu0 %v247
  %677 = vmatpush.msra.mxu0 %v246
  %678 = vmatpush.msra.mxu0 %v245
  %679 = vmatpush.msra.mxu0 %v244
  %680 = vmatpush.msra.mxu0 %v243
  %681 = vmatpush.msra.mxu0 %v242
  %682 = vmatpush.msra.mxu0 %v241
  %683 = vmatpush.msra.mxu0 %v240
  %684 = vmatpush.msra.mxu0 %v239
  %685 = vmatpush.msra.mxu0 %v238
  %686 = vmatpush.msra.mxu0 %v237
  %687 = vmatpush.msra.mxu0 %v236
  %688 = vmatmul.f32.gmra.mxu0 %v47
  %v689 = vpop.f32.mrf.mxu0
  %v690 = vadd.f32 %v661, %v689
  %691 = vmatmul.f32.gmra.mxu0 %v68
  %v692 = vpop.f32.mrf.mxu0
  %v693 = vadd.f32 %v664, %v692
  %694 = vmatmul.f32.gmra.mxu0 %v89
  %v695 = vpop.f32.mrf.mxu0
  %v696 = vadd.f32 %v667, %v695
  %697 = vmatmul.f32.gmra.mxu0 %v110
  %v698 = vpop.f32.mrf.mxu0
  %v699 = vadd.f32 %v670, %v698
  %700 = vdwg.mxu0
  %701 = vmatpush.msra.mxu0 %v267
  %702 = vmatpush.msra.mxu0 %v266
  %703 = vmatpush.msra.mxu0 %v265
  %704 = vmatpush.msra.mxu0 %v264
  %705 = vmatpush.msra.mxu0 %v263
  %706 = vmatpush.msra.mxu0 %v262
  %707 = vmatpush.msra.mxu0 %v261
  %708 = vmatpush.msra.mxu0 %v260
  %709 = vmatpush.msra.mxu0 %v259
  %710 = vmatpush.msra.mxu0 %v258
  %711 = vmatpush.msra.mxu0 %v257
  %712 = vmatpush.msra.mxu0 %v256
  %713 = vmatpush.msra.mxu0 %v255
  %714 = vmatpush.msra.mxu0 %v254
  %715 = vmatpush.msra.mxu0 %v253
  %716 = vmatpush.msra.mxu0 %v252
  %717 = vmatmul.f32.gmra.mxu0 %v48
  %v718 = vpop.f32.mrf.mxu0
  %v719 = vadd.f32 %v690, %v718
  %720 = vmatmul.f32.gmra.mxu0 %v69
  %v721 = vpop.f32.mrf.mxu0
  %v722 = vadd.f32 %v693, %v721
  %723 = vmatmul.f32.gmra.mxu0 %v90
  %v724 = vpop.f32.mrf.mxu0
  %v725 = vadd.f32 %v696, %v724
  %726 = vmatmul.f32.gmra.mxu0 %v111
  %v727 = vpop.f32.mrf.mxu0
  %v728 = vadd.f32 %v699, %v727
  %729 = vdwg.mxu0
  %730 = vmatpush.msra.mxu0 %v283
  %731 = vmatpush.msra.mxu0 %v282
  %732 = vmatpush.msra.mxu0 %v281
  %733 = vmatpush.msra.mxu0 %v280
  %734 = vmatpush.msra.mxu0 %v279
  %735 = vmatpush.msra.mxu0 %v278
  %736 = vmatpush.msra.mxu0 %v277
  %737 = vmatpush.msra.mxu0 %v276
  %738 = vmatpush.msra.mxu0 %v275
  %739 = vmatpush.msra.mxu0 %v274
  %740 = vmatpush.msra.mxu0 %v273
  %741 = vmatpush.msra.mxu0 %v272
  %742 = vmatpush.msra.mxu0 %v271
  %743 = vmatpush.msra.mxu0 %v270
  %744 = vmatpush.msra.mxu0 %v269
  %745 = vmatpush.msra.mxu0 %v268
  %746 = vmatmul.f32.gmra.mxu0 %v49
  %v747 = vpop.f32.mrf.mxu0
  %v748 = vadd.f32 %v719, %v747
  %749 = vmatmul.f32.gmra.mxu0 %v70
  %v750 = vpop.f32.mrf.mxu0
  %v751 = vadd.f32 %v722, %v750
  %752 = vmatmul.f32.gmra.mxu0 %v91
  %v753 = vpop.f32.mrf.mxu0
  %v754 = vadd.f32 %v725, %v753
  %755 = vmatmul.f32.gmra.mxu0 %v112
  %v756 = vpop.f32.mrf.mxu0
  %v757 = vadd.f32 %v728, %v756
  %758 = vdwg.mxu0
  %759 = vmatpush.msra.mxu0 %v299
  %760 = vmatpush.msra.mxu0 %v298
  %761 = vmatpush.msra.mxu0 %v297
  %762 = vmatpush.msra.mxu0 %v296
  %763 = vmatpush.msra.mxu0 %v295
  %764 = vmatpush.msra.mxu0 %v294
  %765 = vmatpush.msra.mxu0 %v293
  %766 = vmatpush.msra.mxu0 %v292
  %767 = vmatpush.msra.mxu0 %v291
  %768 = vmatpush.msra.mxu0 %v290
  %769 = vmatpush.msra.mxu0 %v289
  %770 = vmatpush.msra.mxu0 %v288
  %771 = vmatpush.msra.mxu0 %v287
  %772 = vmatpush.msra.mxu0 %v286
  %773 = vmatpush.msra.mxu0 %v285
  %774 = vmatpush.msra.mxu0 %v284
  %775 = vmatmul.f32.gmra.mxu0 %v50
  %v776 = vpop.f32.mrf.mxu0
  %v777 = vadd.f32 %v748, %v776
  %778 = vmatmul.f32.gmra.mxu0 %v71
  %v779 = vpop.f32.mrf.mxu0
  %v780 = vadd.f32 %v751, %v779
  %781 = vmatmul.f32.gmra.mxu0 %v92
  %v782 = vpop.f32.mrf.mxu0
  %v783 = vadd.f32 %v754, %v782
  %784 = vmatmul.f32.gmra.mxu0 %v113
  %v785 = vpop.f32.mrf.mxu0
  %v786 = vadd.f32 %v757, %v785
  %787 = vdwg.mxu0
  %788 = vmatpush.msra.mxu0 %v315
  %789 = vmatpush.msra.mxu0 %v314
  %790 = vmatpush.msra.mxu0 %v313
  %791 = vmatpush.msra.mxu0 %v312
  %792 = vmatpush.msra.mxu0 %v311
  %793 = vmatpush.msra.mxu0 %v310
  %794 = vmatpush.msra.mxu0 %v309
  %795 = vmatpush.msra.mxu0 %v308
  %796 = vmatpush.msra.mxu0 %v307
  %797 = vmatpush.msra.mxu0 %v306
  %798 = vmatpush.msra.mxu0 %v305
  %799 = vmatpush.msra.mxu0 %v304
  %800 = vmatpush.msra.mxu0 %v303
  %801 = vmatpush.msra.mxu0 %v302
  %802 = vmatpush.msra.mxu0 %v301
  %803 = vmatpush.msra.mxu0 %v300
  %804 = vmatmul.f32.gmra.mxu0 %v51
  %v805 = vpop.f32.mrf.mxu0
  %v806 = vadd.f32 %v777, %v805
  %807 = vmatmul.f32.gmra.mxu0 %v72
  %v808 = vpop.f32.mrf.mxu0
  %v809 = vadd.f32 %v780, %v808
  %810 = vmatmul.f32.gmra.mxu0 %v93
  %v811 = vpop.f32.mrf.mxu0
  %v812 = vadd.f32 %v783, %v811
  %813 = vmatmul.f32.gmra.mxu0 %v114
  %v814 = vpop.f32.mrf.mxu0
  %v815 = vadd.f32 %v786, %v814
  %816 = vdwg.mxu0
  %817 = vmatpush.msra.mxu0 %v331
  %818 = vmatpush.msra.mxu0 %v330
  %819 = vmatpush.msra.mxu0 %v329
  %820 = vmatpush.msra.mxu0 %v328
  %821 = vmatpush.msra.mxu0 %v327
  %822 = vmatpush.msra.mxu0 %v326
  %823 = vmatpush.msra.mxu0 %v325
  %824 = vmatpush.msra.mxu0 %v324
  %825 = vmatpush.msra.mxu0 %v323
  %826 = vmatpush.msra.mxu0 %v322
  %827 = vmatpush.msra.mxu0 %v321
  %828 = vmatpush.msra.mxu0 %v320
  %829 = vmatpush.msra.mxu0 %v319
  %830 = vmatpush.msra.mxu0 %v318
  %831 = vmatpush.msra.mxu0 %v317
  %832 = vmatpush.msra.mxu0 %v316
  %833 = vmatmul.f32.gmra.mxu0 %v52
  %v834 = vpop.f32.mrf.mxu0
  %v835 = vadd.f32 %v806, %v834
  %836 = vmatmul.f32.gmra.mxu0 %v73
  %v837 = vpop.f32.mrf.mxu0
  %v838 = vadd.f32 %v809, %v837
  %839 = vmatmul.f32.gmra.mxu0 %v94
  %v840 = vpop.f32.mrf.mxu0
  %v841 = vadd.f32 %v812, %v840
  %842 = vmatmul.f32.gmra.mxu0 %v115
  %v843 = vpop.f32.mrf.mxu0
  %v844 = vadd.f32 %v815, %v843
  %845 = vdwg.mxu0
  %846 = vmatpush.msra.mxu0 %v347
  %847 = vmatpush.msra.mxu0 %v346
  %848 = vmatpush.msra.mxu0 %v345
  %849 = vmatpush.msra.mxu0 %v344
  %850 = vmatpush.msra.mxu0 %v343
  %851 = vmatpush.msra.mxu0 %v342
  %852 = vmatpush.msra.mxu0 %v341
  %853 = vmatpush.msra.mxu0 %v340
  %854 = vmatpush.msra.mxu0 %v339
  %855 = vmatpush.msra.mxu0 %v338
  %856 = vmatpush.msra.mxu0 %v337
  %857 = vmatpush.msra.mxu0 %v336
  %858 = vmatpush.msra.mxu0 %v335
  %859 = vmatpush.msra.mxu0 %v334
  %860 = vmatpush.msra.mxu0 %v333
  %861 = vmatpush.msra.mxu0 %v332
  %862 = vmatmul.f32.gmra.mxu0 %v53
  %v863 = vpop.f32.mrf.mxu0
  %v864 = vadd.f32 %v835, %v863
  %865 = vmatmul.f32.gmra.mxu0 %v74
  %v866 = vpop.f32.mrf.mxu0
  %v867 = vadd.f32 %v838, %v866
  %868 = vmatmul.f32.gmra.mxu0 %v95
  %v869 = vpop.f32.mrf.mxu0
  %v870 = vadd.f32 %v841, %v869
  %871 = vmatmul.f32.gmra.mxu0 %v116
  %v872 = vpop.f32.mrf.mxu0
  %v873 = vadd.f32 %v844, %v872
  %874 = vdwg.mxu0
  %875 = vmatpush.msra.mxu0 %v363
  %876 = vmatpush.msra.mxu0 %v362
  %877 = vmatpush.msra.mxu0 %v361
  %878 = vmatpush.msra.mxu0 %v360
  %879 = vmatpush.msra.mxu0 %v359
  %880 = vmatpush.msra.mxu0 %v358
  %881 = vmatpush.msra.mxu0 %v357
  %882 = vmatpush.msra.mxu0 %v356
  %883 = vmatpush.msra.mxu0 %v355
  %884 = vmatpush.msra.mxu0 %v354
  %885 = vmatpush.msra.mxu0 %v353
  %886 = vmatpush.msra.mxu0 %v352
  %887 = vmatpush.msra.mxu0 %v351
  %888 = vmatpush.msra.mxu0 %v350
  %889 = vmatpush.msra.mxu0 %v349
  %890 = vmatpush.msra.mxu0 %v348
  %891 = vmatmul.f32.gmra.mxu0 %v54
  %v892 = vpop.f32.mrf.mxu0
  %v893 = vadd.f32 %v864, %v892
  %894 = vmatmul.f32.gmra.mxu0 %v75
  %v895 = vpop.f32.mrf.mxu0
  %v896 = vadd.f32 %v867, %v895
  %897 = vmatmul.f32.gmra.mxu0 %v96
  %v898 = vpop.f32.mrf.mxu0
  %v899 = vadd.f32 %v870, %v898
  %900 = vmatmul.f32.gmra.mxu0 %v117
  %v901 = vpop.f32.mrf.mxu0
  %v902 = vadd.f32 %v873, %v901
  %903 = vdwg.mxu0
  %904 = vmatpush.msra.mxu0 %v379
  %905 = vmatpush.msra.mxu0 %v378
  %906 = vmatpush.msra.mxu0 %v377
  %907 = vmatpush.msra.mxu0 %v376
  %908 = vmatpush.msra.mxu0 %v375
  %909 = vmatpush.msra.mxu0 %v374
  %910 = vmatpush.msra.mxu0 %v373
  %911 = vmatpush.msra.mxu0 %v372
  %912 = vmatpush.msra.mxu0 %v371
  %913 = vmatpush.msra.mxu0 %v370
  %914 = vmatpush.msra.mxu0 %v369
  %915 = vmatpush.msra.mxu0 %v368
  %916 = vmatpush.msra.mxu0 %v367
  %917 = vmatpush.msra.mxu0 %v366
  %918 = vmatpush.msra.mxu0 %v365
  %919 = vmatpush.msra.mxu0 %v364
  %920 = vmatmul.f32.gmra.mxu0 %v55
  %v921 = vpop.f32.mrf.mxu0
  %v922 = vadd.f32 %v893, %v921
  %923 = vmatmul.f32.gmra.mxu0 %v76
  %v924 = vpop.f32.mrf.mxu0
  %v925 = vadd.f32 %v896, %v924
  %926 = vmatmul.f32.gmra.mxu0 %v97
  %v927 = vpop.f32.mrf.mxu0
  %v928 = vadd.f32 %v899, %v927
  %929 = vmatmul.f32.gmra.mxu0 %v118
  %v930 = vpop.f32.mrf.mxu0
  %v931 = vadd.f32 %v902, %v930
  %932 = vdwg.mxu0
  %933 = vmatpush.msra.mxu0 %v395
  %934 = vmatpush.msra.mxu0 %v394
  %935 = vmatpush.msra.mxu0 %v393
  %936 = vmatpush.msra.mxu0 %v392
  %937 = vmatpush.msra.mxu0 %v391
  %938 = vmatpush.msra.mxu0 %v390
  %939 = vmatpush.msra.mxu0 %v389
  %940 = vmatpush.msra.mxu0 %v388
  %941 = vmatpush.msra.mxu0 %v387
  %942 = vmatpush.msra.mxu0 %v386
  %943 = vmatpush.msra.mxu0 %v385
  %944 = vmatpush.msra.mxu0 %v384
  %945 = vmatpush.msra.mxu0 %v383
  %946 = vmatpush.msra.mxu0 %v382
  %947 = vmatpush.msra.mxu0 %v381
  %948 = vmatpush.msra.mxu0 %v380
  %949 = vmatmul.f32.gmra.mxu0 %v56
  %v950 = vpop.f32.mrf.mxu0
  %v951 = vadd.f32 %v922, %v950
  %952 = vmatmul.f32.gmra.mxu0 %v77
  %v953 = vpop.f32.mrf.mxu0
  %v954 = vadd.f32 %v925, %v953
  %955 = vmatmul.f32.gmra.mxu0 %v98
  %v956 = vpop.f32.mrf.mxu0
  %v957 = vadd.f32 %v928, %v956
  %958 = vmatmul.f32.gmra.mxu0 %v119
  %v959 = vpop.f32.mrf.mxu0
  %v960 = vadd.f32 %v931, %v959
  %961 = vdwg.mxu0
  %962 = vmatpush.msra.mxu0 %v411
  %963 = vmatpush.msra.mxu0 %v410
  %964 = vmatpush.msra.mxu0 %v409
  %965 = vmatpush.msra.mxu0 %v408
  %966 = vmatpush.msra.mxu0 %v407
  %967 = vmatpush.msra.mxu0 %v406
  %968 = vmatpush.msra.mxu0 %v405
  %969 = vmatpush.msra.mxu0 %v404
  %970 = vmatpush.msra.mxu0 %v403
  %971 = vmatpush.msra.mxu0 %v402
  %972 = vmatpush.msra.mxu0 %v401
  %973 = vmatpush.msra.mxu0 %v400
  %974 = vmatpush.msra.mxu0 %v399
  %975 = vmatpush.msra.mxu0 %v398
  %976 = vmatpush.msra.mxu0 %v397
  %977 = vmatpush.msra.mxu0 %v396
  %978 = vmatmul.f32.gmra.mxu0 %v57
  %v979 = vpop.f32.mrf.mxu0
  %v980 = vadd.f32 %v951, %v979
  %981 = vmatmul.f32.gmra.mxu0 %v78
  %v982 = vpop.f32.mrf.mxu0
  %v983 = vadd.f32 %v954, %v982
  %984 = vmatmul.f32.gmra.mxu0 %v99
  %v985 = vpop.f32.mrf.mxu0
  %v986 = vadd.f32 %v957, %v985
  %987 = vmatmul.f32.gmra.mxu0 %v120
  %v988 = vpop.f32.mrf.mxu0
  %v989 = vadd.f32 %v960, %v988
  %990 = vdwg.mxu0
  %991 = vmatpush.msra.mxu0 %v427
  %992 = vmatpush.msra.mxu0 %v426
  %993 = vmatpush.msra.mxu0 %v425
  %994 = vmatpush.msra.mxu0 %v424
  %995 = vmatpush.msra.mxu0 %v423
  %996 = vmatpush.msra.mxu0 %v422
  %997 = vmatpush.msra.mxu0 %v421
  %998 = vmatpush.msra.mxu0 %v420
  %999 = vmatpush.msra.mxu0 %v419
  %1000 = vmatpush.msra.mxu0 %v418
  %1001 = vmatpush.msra.mxu0 %v417
  %1002 = vmatpush.msra.mxu0 %v416
  %1003 = vmatpush.msra.mxu0 %v415
  %1004 = vmatpush.msra.mxu0 %v414
  %1005 = vmatpush.msra.mxu0 %v413
  %1006 = vmatpush.msra.mxu0 %v412
  %1007 = vmatmul.f32.gmra.mxu0 %v58
  %v1008 = vpop.f32.mrf.mxu0
  %v1009 = vadd.f32 %v980, %v1008
  %1010 = vmatmul.f32.gmra.mxu0 %v79
  %v1011 = vpop.f32.mrf.mxu0
  %v1012 = vadd.f32 %v983, %v1011
  %1013 = vmatmul.f32.gmra.mxu0 %v100
  %v1014 = vpop.f32.mrf.mxu0
  %v1015 = vadd.f32 %v986, %v1014
  %1016 = vmatmul.f32.gmra.mxu0 %v121
  %v1017 = vpop.f32.mrf.mxu0
  %v1018 = vadd.f32 %v989, %v1017
  %1019 = vdwg.mxu0
  %1020 = vmatpush.msra.mxu0 %v443
  %1021 = vmatpush.msra.mxu0 %v442
  %1022 = vmatpush.msra.mxu0 %v441
  %1023 = vmatpush.msra.mxu0 %v440
  %1024 = vmatpush.msra.mxu0 %v439
  %1025 = vmatpush.msra.mxu0 %v438
  %1026 = vmatpush.msra.mxu0 %v437
  %1027 = vmatpush.msra.mxu0 %v436
  %1028 = vmatpush.msra.mxu0 %v435
  %1029 = vmatpush.msra.mxu0 %v434
  %1030 = vmatpush.msra.mxu0 %v433
  %1031 = vmatpush.msra.mxu0 %v432
  %1032 = vmatpush.msra.mxu0 %v431
  %1033 = vmatpush.msra.mxu0 %v430
  %1034 = vmatpush.msra.mxu0 %v429
  %1035 = vmatpush.msra.mxu0 %v428
  %1036 = vmatmul.f32.gmra.mxu0 %v59
  %v1037 = vpop.f32.mrf.mxu0
  %v1038 = vadd.f32 %v1009, %v1037
  %1039 = vmatmul.f32.gmra.mxu0 %v80
  %v1040 = vpop.f32.mrf.mxu0
  %v1041 = vadd.f32 %v1012, %v1040
  %1042 = vmatmul.f32.gmra.mxu0 %v101
  %v1043 = vpop.f32.mrf.mxu0
  %v1044 = vadd.f32 %v1015, %v1043
  %1045 = vmatmul.f32.gmra.mxu0 %v122
  %v1046 = vpop.f32.mrf.mxu0
  %v1047 = vadd.f32 %v1018, %v1046
  %1048 = vdwg.mxu0
  %1049 = vmatpush.msra.mxu0 0.0
  %1050 = vmatpush.msra.mxu0 0.0
  %1051 = vmatpush.msra.mxu0 0.0
  %1052 = vmatpush.msra.mxu0 0.0
  %1053 = vmatpush.msra.mxu0 0.0
  %1054 = vmatpush.msra.mxu0 0.0
  %1055 = vmatpush.msra.mxu0 0.0
  %1056 = vmatpush.msra.mxu0 0.0
  %1057 = vmatpush.msra.mxu0 %v451
  %1058 = vmatpush.msra.mxu0 %v450
  %1059 = vmatpush.msra.mxu0 %v449
  %1060 = vmatpush.msra.mxu0 %v448
  %1061 = vmatpush.msra.mxu0 %v447
  %1062 = vmatpush.msra.mxu0 %v446
  %1063 = vmatpush.msra.mxu0 %v445
  %1064 = vmatpush.msra.mxu0 %v444
  %1065 = vmatmul.f32.gmra.mxu0 %v458
  %v1066 = vpop.f32.mrf.mxu0
  %v1067 = vadd.f32 %v1038, %v1066
  %1068 = vmatmul.f32.gmra.mxu0 %v461
  %v1069 = vpop.f32.mrf.mxu0
  %v1070 = vadd.f32 %v1041, %v1069
  %1071 = vmatmul.f32.gmra.mxu0 %v464
  %v1072 = vpop.f32.mrf.mxu0
  %v1073 = vadd.f32 %v1044, %v1072
  %1074 = vmatmul.f32.gmra.mxu0 %v467
  %v1075 = vpop.f32.mrf.mxu0
  %v1076 = vadd.f32 %v1047, %v1075
  %1077 = vdwg.mxu0
  %v1078 = vld [vmem:[%s7] sm:$0xff]
  %v1079 = vld [vmem:[%s7 + $0x8] sm:$0xff]
  %v1080 = vld [vmem:[%s7 + $0x10] sm:$0xff]
  %v1081 = vld [vmem:[%s7 + $0x18] sm:$0xff]
  %v1082 = vld [vmem:[%s7 + $0x20] sm:$0xff]
  %v1083 = vld [vmem:[%s7 + $0x28] sm:$0xff]
  %v1084 = vld [vmem:[%s7 + $0x30] sm:$0xff]
  %v1085 = vld [vmem:[%s7 + $0x38] sm:$0xff]
  %v1086 = vld [vmem:[%s7 + $0x40] sm:$0xff]
  %v1087 = vld [vmem:[%s7 + $0x48] sm:$0xff]
  %v1088 = vld [vmem:[%s7 + $0x50] sm:$0xff]
  %v1089 = vld [vmem:[%s7 + $0x58] sm:$0xff]
  %v1090 = vld [vmem:[%s7 + $0x60] sm:$0xff]
  %v1091 = vld [vmem:[%s7 + $0x68] sm:$0xff]
  %v1092 = vld [vmem:[%s7 + $0x70] sm:$0xff]
  %v1093 = vld [vmem:[%s7 + $0x78] sm:$0xff]
  %v1094 = vld [vmem:[%s7 + $0x80] sm:$0xff]
  %v1095 = vld [vmem:[%s7 + $0x88] sm:$0xff]
  %v1096 = vld [vmem:[%s7 + $0x90] sm:$0xff]
  %v1097 = vld [vmem:[%s7 + $0x98] sm:$0xff]
  %v1098 = vld [vmem:[%s7 + $0xa0] sm:$0xff]
  %v1099 = vld [vmem:[%s7 + $0xa8] sm:$0xff]
  %v1100 = vld [vmem:[%s7 + $0xb0] sm:$0xff]
  %v1101 = vld [vmem:[%s7 + $0xb8] sm:$0xff]
  %v1102 = vld [vmem:[%s7 + $0xc0] sm:$0xff]
  %v1103 = vld [vmem:[%s7 + $0xc8] sm:$0xff]
  %v1104 = vld [vmem:[%s7 + $0xd0] sm:$0xff]
  %v1105 = vld [vmem:[%s7 + $0xd8] sm:$0xff]
  %v1106 = vld [vmem:[%s7 + $0xe0] sm:$0xff]
  %v1107 = vld [vmem:[%s7 + $0xe8] sm:$0xff]
  %v1108 = vld [vmem:[%s7 + $0xf0] sm:$0xff]
  %v1109 = vld [vmem:[%s7 + $0xf8] sm:$0xff]
  %v1110 = vld [vmem:[%s7 + $0x100] sm:$0xff]
  %v1111 = vld [vmem:[%s7 + $0x108] sm:$0xff]
  %v1112 = vld [vmem:[%s7 + $0x110] sm:$0xff]
  %v1113 = vld [vmem:[%s7 + $0x118] sm:$0xff]
  %v1114 = vld [vmem:[%s7 + $0x120] sm:$0xff]
  %v1115 = vld [vmem:[%s7 + $0x128] sm:$0xff]
  %v1116 = vld [vmem:[%s7 + $0x130] sm:$0xff]
  %v1117 = vld [vmem:[%s7 + $0x138] sm:$0xff]
  %v1118 = vld [vmem:[%s7 + $0x140] sm:$0xff]
  %v1119 = vld [vmem:[%s7 + $0x148] sm:$0xff]
  %v1120 = vld [vmem:[%s7 + $0x150] sm:$0xff]
  %v1121 = vld [vmem:[%s7 + $0x158] sm:$0xff]
  %v1122 = vld [vmem:[%s7 + $0x160] sm:$0xff]
  %v1123 = vld [vmem:[%s7 + $0x168] sm:$0xff]
  %v1124 = vld [vmem:[%s7 + $0x170] sm:$0xff]
  %v1125 = vld [vmem:[%s7 + $0x178] sm:$0xff]
  %v1126 = vld [vmem:[%s1] sm:$0xff]
  %v1127 = vld [vmem:[%s1 + $0x8] sm:$0xff]
  %v1128 = vld [vmem:[%s1 + $0x10] sm:$0xff]
  %v1129 = vld [vmem:[%s1 + $0x18] sm:$0xff]
  %v1130 = vld [vmem:[%s8] sm:$0xff]
  %v1131 = vld [vmem:[%s8 + $0x8] sm:$0xff]
  %v1132 = vld [vmem:[%s8 + $0x10] sm:$0xff]
  %vm1133 = vcmask 64512
  %v1135 = vsel %vm1133, %v1126, 0
  %v1138 = vsel %vm1133, %v1127, 0
  %v1141 = vsel %vm1133, %v1128, 0
  %v1144 = vsel %vm1133, %v1129, 0
  %1146 = vmatpush.msra.mxu0 0.0
  %1147 = vmatpush.msra.mxu0 0.0
  %1148 = vmatpush.msra.mxu0 0.0
  %1149 = vmatpush.msra.mxu0 0.0
  %1150 = vmatpush.msra.mxu0 0.0
  %1151 = vmatpush.msra.mxu0 0.0
  %1152 = vmatpush.msra.mxu0 0.0
  %1153 = vmatpush.msra.mxu0 0.0
  %1154 = vmatpush.msra.mxu0 0.0
  %1155 = vmatpush.msra.mxu0 0.0
  %1156 = vmatpush.msra.mxu0 0.0
  %1157 = vmatpush.msra.mxu0 0.0
  %1158 = vmatpush.msra.mxu0 0.0
  %1159 = vmatpush.msra.mxu0 0.0
  %1160 = vmatpush.msra.mxu0 0.0
  %1161 = vmatpush.msra.mxu0 %v1130
  %1162 = vmatmul.f32.gmra.mxu0 %v1135
  %v1163 = vpop.f32.mrf.mxu0
  %v1164 = vadd.f32 0.0, %v1163
  %1165 = vmatmul.f32.gmra.mxu0 %v1138
  %v1166 = vpop.f32.mrf.mxu0
  %v1167 = vadd.f32 0.0, %v1166
  %1168 = vmatmul.f32.gmra.mxu0 %v1141
  %v1169 = vpop.f32.mrf.mxu0
  %v1170 = vadd.f32 0.0, %v1169
  %1171 = vmatmul.f32.gmra.mxu0 %v1144
  %v1172 = vpop.f32.mrf.mxu0
  %v1173 = vadd.f32 0.0, %v1172
  %1174 = vdwg.mxu0
  %1175 = vmatpush.msra.mxu0 0.0
  %1176 = vmatpush.msra.mxu0 0.0
  %1177 = vmatpush.msra.mxu0 0.0
  %1178 = vmatpush.msra.mxu0 0.0
  %1179 = vmatpush.msra.mxu0 0.0
  %1180 = vmatpush.msra.mxu0 0.0
  %1181 = vmatpush.msra.mxu0 0.0
  %1182 = vmatpush.msra.mxu0 0.0
  %1183 = vmatpush.msra.mxu0 0.0
  %1184 = vmatpush.msra.mxu0 0.0
  %1185 = vmatpush.msra.mxu0 0.0
  %1186 = vmatpush.msra.mxu0 0.0
  %1187 = vmatpush.msra.mxu0 0.0
  %1188 = vmatpush.msra.mxu0 0.0
  %1189 = vmatpush.msra.mxu0 0.0
  %1190 = vmatpush.msra.mxu0 %v1131
  %1191 = vmatmul.f32.gmra.mxu0 %v1135
  %v1192 = vpop.f32.mrf.mxu0
  %v1193 = vadd.f32 0.0, %v1192
  %1194 = vmatmul.f32.gmra.mxu0 %v1138
  %v1195 = vpop.f32.mrf.mxu0
  %v1196 = vadd.f32 0.0, %v1195
  %1197 = vmatmul.f32.gmra.mxu0 %v1141
  %v1198 = vpop.f32.mrf.mxu0
  %v1199 = vadd.f32 0.0, %v1198
  %1200 = vmatmul.f32.gmra.mxu0 %v1144
  %v1201 = vpop.f32.mrf.mxu0
  %v1202 = vadd.f32 0.0, %v1201
  %1203 = vdwg.mxu0
  %1204 = vmatpush.msra.mxu0 0.0
  %1205 = vmatpush.msra.mxu0 0.0
  %1206 = vmatpush.msra.mxu0 0.0
  %1207 = vmatpush.msra.mxu0 0.0
  %1208 = vmatpush.msra.mxu0 0.0
  %1209 = vmatpush.msra.mxu0 0.0
  %1210 = vmatpush.msra.mxu0 0.0
  %1211 = vmatpush.msra.mxu0 0.0
  %1212 = vmatpush.msra.mxu0 0.0
  %1213 = vmatpush.msra.mxu0 0.0
  %1214 = vmatpush.msra.mxu0 0.0
  %1215 = vmatpush.msra.mxu0 0.0
  %1216 = vmatpush.msra.mxu0 0.0
  %1217 = vmatpush.msra.mxu0 0.0
  %1218 = vmatpush.msra.mxu0 0.0
  %1219 = vmatpush.msra.mxu0 %v1132
  %1220 = vmatmul.f32.gmra.mxu0 %v1135
  %v1221 = vpop.f32.mrf.mxu0
  %v1222 = vadd.f32 0.0, %v1221
  %1223 = vmatmul.f32.gmra.mxu0 %v1138
  %v1224 = vpop.f32.mrf.mxu0
  %v1225 = vadd.f32 0.0, %v1224
  %1226 = vmatmul.f32.gmra.mxu0 %v1141
  %v1227 = vpop.f32.mrf.mxu0
  %v1228 = vadd.f32 0.0, %v1227
  %1229 = vmatmul.f32.gmra.mxu0 %v1144
  %v1230 = vpop.f32.mrf.mxu0
  %v1231 = vadd.f32 0.0, %v1230
  %1232 = vdwg.mxu0
  %1233 = vmatpush.msra.mxu0 %v1123
  %1234 = vmatpush.msra.mxu0 %v1120
  %1235 = vmatpush.msra.mxu0 %v1117
  %1236 = vmatpush.msra.mxu0 %v1114
  %1237 = vmatpush.msra.mxu0 %v1111
  %1238 = vmatpush.msra.mxu0 %v1108
  %1239 = vmatpush.msra.mxu0 %v1105
  %1240 = vmatpush.msra.mxu0 %v1102
  %1241 = vmatpush.msra.mxu0 %v1099
  %1242 = vmatpush.msra.mxu0 %v1096
  %1243 = vmatpush.msra.mxu0 %v1093
  %1244 = vmatpush.msra.mxu0 %v1090
  %1245 = vmatpush.msra.mxu0 %v1087
  %1246 = vmatpush.msra.mxu0 %v1084
  %1247 = vmatpush.msra.mxu0 %v1081
  %1248 = vmatpush.msra.mxu0 %v1078
  %1249 = vmatmul.f32.gmra.mxu0 %v1067
  %v1250 = vpop.f32.mrf.mxu0
  %v1251 = vadd.f32 %v1164, %v1250
  %1252 = vmatmul.f32.gmra.mxu0 %v1070
  %v1253 = vpop.f32.mrf.mxu0
  %v1254 = vadd.f32 %v1167, %v1253
  %1255 = vmatmul.f32.gmra.mxu0 %v1073
  %v1256 = vpop.f32.mrf.mxu0
  %v1257 = vadd.f32 %v1170, %v1256
  %1258 = vmatmul.f32.gmra.mxu0 %v1076
  %v1259 = vpop.f32.mrf.mxu0
  %v1260 = vadd.f32 %v1173, %v1259
  %1261 = vdwg.mxu0
  %1262 = vmatpush.msra.mxu0 %v1124
  %1263 = vmatpush.msra.mxu0 %v1121
  %1264 = vmatpush.msra.mxu0 %v1118
  %1265 = vmatpush.msra.mxu0 %v1115
  %1266 = vmatpush.msra.mxu0 %v1112
  %1267 = vmatpush.msra.mxu0 %v1109
  %1268 = vmatpush.msra.mxu0 %v1106
  %1269 = vmatpush.msra.mxu0 %v1103
  %1270 = vmatpush.msra.mxu0 %v1100
  %1271 = vmatpush.msra.mxu0 %v1097
  %1272 = vmatpush.msra.mxu0 %v1094
  %1273 = vmatpush.msra.mxu0 %v1091
  %1274 = vmatpush.msra.mxu0 %v1088
  %1275 = vmatpush.msra.mxu0 %v1085
  %1276 = vmatpush.msra.mxu0 %v1082
  %1277 = vmatpush.msra.mxu0 %v1079
  %1278 = vmatmul.f32.gmra.mxu0 %v1067
  %v1279 = vpop.f32.mrf.mxu0
  %v1280 = vadd.f32 %v1193, %v1279
  %1281 = vmatmul.f32.gmra.mxu0 %v1070
  %v1282 = vpop.f32.mrf.mxu0
  %v1283 = vadd.f32 %v1196, %v1282
  %1284 = vmatmul.f32.gmra.mxu0 %v1073
  %v1285 = vpop.f32.mrf.mxu0
  %v1286 = vadd.f32 %v1199, %v1285
  %1287 = vmatmul.f32.gmra.mxu0 %v1076
  %v1288 = vpop.f32.mrf.mxu0
  %v1289 = vadd.f32 %v1202, %v1288
  %1290 = vdwg.mxu0
  %1291 = vmatpush.msra.mxu0 %v1125
  %1292 = vmatpush.msra.mxu0 %v1122
  %1293 = vmatpush.msra.mxu0 %v1119
  %1294 = vmatpush.msra.mxu0 %v1116
  %1295 = vmatpush.msra.mxu0 %v1113
  %1296 = vmatpush.msra.mxu0 %v1110
  %1297 = vmatpush.msra.mxu0 %v1107
  %1298 = vmatpush.msra.mxu0 %v1104
  %1299 = vmatpush.msra.mxu0 %v1101
  %1300 = vmatpush.msra.mxu0 %v1098
  %1301 = vmatpush.msra.mxu0 %v1095
  %1302 = vmatpush.msra.mxu0 %v1092
  %1303 = vmatpush.msra.mxu0 %v1089
  %1304 = vmatpush.msra.mxu0 %v1086
  %1305 = vmatpush.msra.mxu0 %v1083
  %1306 = vmatpush.msra.mxu0 %v1080
  %1307 = vmatmul.f32.gmra.mxu0 %v1067
  %v1308 = vpop.f32.mrf.mxu0
  %v1309 = vadd.f32 %v1222, %v1308
  %1310 = vmatmul.f32.gmra.mxu0 %v1070
  %v1311 = vpop.f32.mrf.mxu0
  %v1312 = vadd.f32 %v1225, %v1311
  %1313 = vmatmul.f32.gmra.mxu0 %v1073
  %v1314 = vpop.f32.mrf.mxu0
  %v1315 = vadd.f32 %v1228, %v1314
  %1316 = vmatmul.f32.gmra.mxu0 %v1076
  %v1317 = vpop.f32.mrf.mxu0
  %v1318 = vadd.f32 %v1231, %v1317
  %1319 = vdwg.mxu0
  %v1320 = vld [vmem:[%s2] sm:$0xff]
  %v1321 = vld [vmem:[%s2 + $0x8] sm:$0xff]
  %v1322 = vld [vmem:[%s2 + $0x10] sm:$0xff]
  %v1323 = vld [vmem:[%s2 + $0x18] sm:$0xff]
  %vm1324 = vcmask 261120
  %v1326 = vsel %vm1324, %v1320, 0
  %v1329 = vsel %vm1324, %v1321, 0
  %v1332 = vsel %vm1324, %v1322, 0
  %v1335 = vsel %vm1324, %v1323, 0
  %1337 = vmatpush.msra.mxu0 0.0
  %1338 = vmatpush.msra.mxu0 0.0
  %1339 = vmatpush.msra.mxu0 0.0
  %1340 = vmatpush.msra.mxu0 0.0
  %1341 = vmatpush.msra.mxu0 0.0
  %1342 = vmatpush.msra.mxu0 0.0
  %1343 = vmatpush.msra.mxu0 0.0
  %1344 = vmatpush.msra.mxu0 0.0
  %1345 = vmatpush.msra.mxu0 0.0
  %1346 = vmatpush.msra.mxu0 0.0
  %1347 = vmatpush.msra.mxu0 0.0
  %1348 = vmatpush.msra.mxu0 0.0
  %1349 = vmatpush.msra.mxu0 %v1260
  %1350 = vmatpush.msra.mxu0 %v1257
  %1351 = vmatpush.msra.mxu0 %v1254
  %1352 = vmatpush.msra.mxu0 %v1251
  %1353 = vmatmul.f32.gmra.mxu0 %v1326
  %v1354 = vpop.f32.mrf.mxu0
  %v1355 = vadd.f32 %v1280, %v1354
  %1356 = vmatmul.f32.gmra.mxu0 %v1329
  %v1357 = vpop.f32.mrf.mxu0
  %v1358 = vadd.f32 %v1283, %v1357
  %1359 = vmatmul.f32.gmra.mxu0 %v1332
  %v1360 = vpop.f32.mrf.mxu0
  %v1361 = vadd.f32 %v1286, %v1360
  %1362 = vmatmul.f32.gmra.mxu0 %v1335
  %v1363 = vpop.f32.mrf.mxu0
  %v1364 = vadd.f32 %v1289, %v1363
  %1365 = vdwg.mxu0
  %v1366 = vld [vmem:[%s3] sm:$0xff]
  %v1367 = vld [vmem:[%s3 + $0x8] sm:$0xff]
  %v1368 = vld [vmem:[%s3 + $0x10] sm:$0xff]
  %v1369 = vld [vmem:[%s3 + $0x18] sm:$0xff]
  %v1371 = vsel %vm1324, %v1366, 0
  %v1374 = vsel %vm1324, %v1367, 0
  %v1377 = vsel %vm1324, %v1368, 0
  %v1380 = vsel %vm1324, %v1369, 0
  %1382 = vmatpush.msra.mxu0 0.0
  %1383 = vmatpush.msra.mxu0 0.0
  %1384 = vmatpush.msra.mxu0 0.0
  %1385 = vmatpush.msra.mxu0 0.0
  %1386 = vmatpush.msra.mxu0 0.0
  %1387 = vmatpush.msra.mxu0 0.0
  %1388 = vmatpush.msra.mxu0 0.0
  %1389 = vmatpush.msra.mxu0 0.0
  %1390 = vmatpush.msra.mxu0 0.0
  %1391 = vmatpush.msra.mxu0 0.0
  %1392 = vmatpush.msra.mxu0 0.0
  %1393 = vmatpush.msra.mxu0 0.0
  %1394 = vmatpush.msra.mxu0 %v1318
  %1395 = vmatpush.msra.mxu0 %v1315
  %1396 = vmatpush.msra.mxu0 %v1312
  %1397 = vmatpush.msra.mxu0 %v1309
  %1398 = vmatmul.f32.gmra.mxu0 %v1371
  %v1399 = vpop.f32.mrf.mxu0
  %v1400 = vadd.f32 0.0, %v1399
  %1401 = vmatmul.f32.gmra.mxu0 %v1374
  %v1402 = vpop.f32.mrf.mxu0
  %v1403 = vadd.f32 0.0, %v1402
  %1404 = vmatmul.f32.gmra.mxu0 %v1377
  %v1405 = vpop.f32.mrf.mxu0
  %v1406 = vadd.f32 0.0, %v1405
  %1407 = vmatmul.f32.gmra.mxu0 %v1380
  %v1408 = vpop.f32.mrf.mxu0
  %v1409 = vadd.f32 0.0, %v1408
  %1410 = vdwg.mxu0
  %v1411 = vadd.f32 %v1355, %v1400
  %v1412 = vadd.f32 %v1358, %v1403
  %v1413 = vadd.f32 %v1361, %v1406
  %v1414 = vadd.f32 %v1364, %v1409
  %vm1415 = vcmp.gt.f32.partialorder %v1411, 0.0
  %vm1416 = vcmp.gt.f32.partialorder %v1412, 0.0
  %vm1417 = vcmp.gt.f32.partialorder %v1413, 0.0
  %vm1418 = vcmp.gt.f32.partialorder %v1414, 0.0
  %v1419 = vmul.f32 %v1411, 0.2
  %v1420 = vmul.f32 %v1412, 0.2
  %v1421 = vmul.f32 %v1413, 0.2
  %v1422 = vmul.f32 %v1414, 0.2
  %v1423 = vsel %vm1415, %v1411, %v1419
  %v1424 = vsel %vm1416, %v1412, %v1420
  %v1425 = vsel %vm1417, %v1413, %v1421
  %v1426 = vsel %vm1418, %v1414, %v1422
  %v1427 = vld [vmem:[%s9] sm:$0xff]
  %v1428 = vld [vmem:[%s9 + $0x8] sm:$0xff]
  %v1429 = vmul.f32 %v1423, %v1427
  %v1430 = vmul.f32 %v1424, %v1428
  %v1431 = vmul.f32 %v1425, %v1427
  %v1432 = vmul.f32 %v1426, %v1428
  %v1433 = vld [vmem:[%s4] sm:$0x3]
  %v1435 = vsel %vm1324, %v1433, 0
  %1437 = vmatpush.msra.mxu0 0.0
  %1438 = vmatpush.msra.mxu0 0.0
  %1439 = vmatpush.msra.mxu0 0.0
  %1440 = vmatpush.msra.mxu0 0.0
  %1441 = vmatpush.msra.mxu0 0.0
  %1442 = vmatpush.msra.mxu0 0.0
  %1443 = vmatpush.msra.mxu0 0.0
  %1444 = vmatpush.msra.mxu0 0.0
  %1445 = vmatpush.msra.mxu0 0.0
  %1446 = vmatpush.msra.mxu0 0.0
  %1447 = vmatpush.msra.mxu0 0.0
  %1448 = vmatpush.msra.mxu0 0.0
  %1449 = vmatpush.msra.mxu0 %v1432
  %1450 = vmatpush.msra.mxu0 %v1431
  %1451 = vmatpush.msra.mxu0 %v1430
  %1452 = vmatpush.msra.mxu0 %v1429
  %1453 = vmatmul.f32.gmra.mxu0 %v1435
  %v1454 = vpop.f32.mrf.mxu0
  %v1455 = vadd.f32 0.0, %v1454
  %1456 = vdwg.mxu0
  %vm1457 = vcmask 1041408
  %v1458 = vsel %vm1457, %v1455, 0.0
  %1459 = vadd.xlane.f32.xlu0 %v1458
  %v1460 = vpop.xlane.xlu0 %1459
  %v1461 = vld [vmem:[#allocation2] sm:$0x1]
  %v1463 = vperm.slane %v1461, 0
  %v1465 = vadd.f32 %v1460, %v1463
  %v1466 = vxor.u32 %v1465, 2147483648
  %v1467 = vmul.f32 %v1466, 1.442695
  %v1468 = vpow.pop %v1467
  %v1469 = vadd.f32 %v1468, 1.0
  %v1470 = vrcp.pop %v1469
  %v1471 = vmul.f32 %v1469, %v1470
  %v1472 = vsub.f32 1.0, %v1471
  %v1473 = vmul.f32 %v1470, %v1472
  %v1474 = vadd.f32 %v1470, %v1473
  %vm1475 = vweird.f32 %v1469
  %vm1476 = vweird.f32 %v1470
  %vm1477 = vmor %vm1475, %vm1476
  %v1478 = vsel %vm1477, %v1470, %v1474
  %v1479 = vand.u32 2147483647, %v1469
  %vm1480 = vcmp.eq.f32.partialorder %v1479, 8.507059e+37
  %v1481 = vand.u32 %v1469, 2147483648
  %v1482 = vor.u32 1.1754944e-38, %v1481
  %v1483 = vsel %vm1480, %v1482, %v1478
  %v1484 = vmul.f32 1.0, %v1483
  %vm1485 = vcmask 1024
  %1486 = vst.msk [vmem:[%s11] sm:$0x3] %vm1485, %v1484
  // Predicated region
  $region46: #{_lambda_.1} parent=0 // pred_check
    _
  $region47: #{_lambda_.1} parent=0 // pred_check_branch
    %1488 = sbr.rel (0) target = $region49
  $region48: #{_lambda_.1} parent=0 // pred_region
    _
  $region49: #{_lambda_.1} parent=0 // pred_fallthru
    _
  // Predicated region
  $region50: #{_lambda_.1} parent=0 // pred_check
    _
  $region51: #{_lambda_.1} parent=0 // pred_check_branch
    %1490 = sbr.rel (0) target = $region53
  $region52: #{_lambda_.1} parent=0 // pred_region
    _
  $region53: #{_lambda_.1} parent=0 // pred_fallthru
    _

</llo_original>
